<compile_context>
chip_gen: v7x
topology: tpu7x:2x2x1
jax: 0.10.0
libtpu: 0.0.40
codegen_flags: <defaults>
</compile_context>

<pallas_src>
import jax
import jax.numpy as jnp
import numpy as np
from jax.experimental import pallas as pl
from jax.experimental.pallas import tpu as pltpu


def _round_up(x, m):
    return (x + m - 1) // m * m


def _mm_gated_attention_kernel(
    l_ref, a_ref, v_ref,
    wl_ref, bl_ref, wa_ref, ba_ref, wv_ref, bv_ref,
    wal_ref, wvl_ref, wav_ref, bg_ref,
    out_ref,
):
    f32 = jnp.float32
    mm_dtype = wl_ref.dtype          # MXU operand dtype (bf16 by default)

    l = l_ref[...]
    a = a_ref[...]
    v = v_ref[...]

    # f32 working copies for gate/blend math (VPU/EUP); keeps v5e on its f32
    # elementwise path even when the slabs are streamed bf16.
    lf = l.astype(f32)
    af = a.astype(f32)
    vf = v.astype(f32)

    # h_m = tanh(m @ W_m + b_m): MXU matmuls in mm_dtype, f32 accumulation.
    hl = jnp.tanh(jnp.dot(l.astype(mm_dtype), wl_ref[...],
                          preferred_element_type=f32) + bl_ref[...])
    ha = jnp.tanh(jnp.dot(a.astype(mm_dtype), wa_ref[...],
                          preferred_element_type=f32) + ba_ref[...])
    hv = jnp.tanh(jnp.dot(v.astype(mm_dtype), wv_ref[...],
                          preferred_element_type=f32) + bv_ref[...])

    def gate(x, y, wg_ref, b):
        # sigmoid(concat([x, y, x*y], -1) @ W + b), W stored lane-major as rows
        # [w_x, w_y, w_xy]: VPU multiplies + a lane reduction keep these
        # lane-width-1 matmuls off the MXU.  All gate math in f32.
        wx = wg_ref[0:1, :]
        wy = wg_ref[1:2, :]
        wxy = wg_ref[2:3, :]
        logit = jnp.sum(x * wx + y * wy + (x * y) * wxy,
                        axis=-1, keepdims=True) + b
        return jax.nn.sigmoid(logit)

    z_al = gate(af, lf, wal_ref, bg_ref[0])   # (tile_n, 1)
    z_vl = gate(vf, lf, wvl_ref, bg_ref[1])
    z_av = gate(af, vf, wav_ref, bg_ref[2])

    # Fused blend of h_al + h_vl + h_av grouped by hl/ha/hv.
    out = ((2.0 - z_al - z_vl) * hl
           + (z_al + z_av) * ha
           + (1.0 + z_vl - z_av) * hv)
    out_ref[...] = out.astype(out_ref.dtype)


def _vmem_capacity_bytes():
    try:
        cap = getattr(pltpu.get_tpu_info(), "vmem_capacity_bytes", None)
        if cap:
            return int(cap)
    except Exception:
        pass
    return 64 << 20          # conservative fallback: v7x per-TensorCore VMEM


def _pick_tile_n(n_tokens, dp, act_item, out_item, w_item, vmem_cap):
    # Budget: resident weights (counted double-buffered in case the
    # single-buffer request isn't honoured) + double-buffered l/a/v/out tiles
    # + f32 elementwise temporaries (hl/ha/hv, gate products, blend).
    resident = 3 * dp * dp * w_item * 2 + 3 * 8 * dp * 4 + 3 * dp * 4 + 12
    per_row = 2 * (3 * act_item + out_item) * dp + 8 * dp * 4
    budget = int(0.8 * vmem_cap) - resident
    tile = 8
    for cand in (1024, 512, 256, 128, 64, 32, 16, 8):
        if cand * per_row <= budget:
            tile = cand
            break
    return max(8, min(tile, _round_up(n_tokens, 8)))


def mm_gated_attention(l, a, v, params, *,
                       matmul_dtype=jnp.bfloat16,
                       act_dtype=jnp.bfloat16,
                       tile_n=None):
    """l, a, v: (B, S, D).  Returns (B, S, D) in l.dtype (eval-mode forward).

    matmul_dtype: operand dtype of the three DxD MXU matmuls (f32 accum).
    act_dtype:    dtype the l/a/v slabs are streamed in from HBM.
    tile_n:       token tile; derived from the device's VMEM capacity if None.
    """
    B, S, D = l.shape
    N = B * S
    out_dtype = l.dtype

    lane_pad = (D % 128) != 0
    Dp = _round_up(D, 128)

    act_item = jnp.dtype(act_dtype).itemsize
    out_item = jnp.dtype(out_dtype).itemsize
    w_item = jnp.dtype(matmul_dtype).itemsize
    vmem_cap = _vmem_capacity_bytes()

    if tile_n is None:
        tile_n = _pick_tile_n(N, Dp, act_item, out_item, w_item, vmem_cap)
    tile_n = max(8, _round_up(min(tile_n, _round_up(N, 8)), 8))
    grid = (pl.cdiv(N, tile_n),)

    def prep_act(x):
        x2 = x.reshape(N, D)
        if lane_pad:
            x2 = jnp.pad(x2, ((0, 0), (0, Dp - D)))
        return x2.astype(act_dtype)

    def prep_w(w):
        if lane_pad:
            w = jnp.pad(w, ((0, Dp - D), (0, Dp - D)))
        return w.astype(matmul_dtype)

    def prep_b(b):
        if lane_pad:
            b = jnp.pad(b, ((0, 0), (0, Dp - D)))
        return b.astype(jnp.float32)

    def prep_gw(w3):
        # (3, D) -> (8, Dp) lane-major rows [w_x, w_y, w_xy]; zero-padded.
        return jnp.pad(w3, ((0, 8 - 3), (0, Dp - D))).astype(jnp.float32)

    l2, a2, v2 = prep_act(l), prep_act(a), prep_act(v)
    wl, wa, wv = prep_w(params["wl"]), prep_w(params["wa"]), prep_w(params["wv"])
    bl, ba, bv = prep_b(params["bl"]), prep_b(params["ba"]), prep_b(params["bv"])
    wal, wvl, wav = prep_gw(params["wal"]), prep_gw(params["wvl"]), prep_gw(params["wav"])
    bg = jnp.stack([params["bal"], params["bvl"], params["bav"]]).astype(jnp.float32)

    out_cols = Dp if lane_pad else D
    out_shape = jax.ShapeDtypeStruct((N, out_cols), out_dtype)

    cost = pl.CostEstimate(
        flops=int(6 * N * Dp * Dp + 24 * N * Dp),
        transcendentals=int(3 * N * Dp + 3 * N),
        bytes_accessed=int(3 * N * Dp * act_item + N * out_cols * out_item
                           + 3 * Dp * Dp * w_item + (3 * 8 + 3) * Dp * 4),
    )
    vmem_limit = int(0.9 * vmem_cap)

    def run(single_buffer_resident):
        def resident(shape):
            idx = lambda i: (0,) * len(shape)
            if single_buffer_resident:
                # Constant index_map -> fetched once; one buffer is enough.
                return pl.BlockSpec(shape, idx, pipeline_mode=pl.Buffered(1))
            return pl.BlockSpec(shape, idx)

        act_spec = pl.BlockSpec((tile_n, Dp), lambda i: (i, 0))
        w_spec = resident((Dp, Dp))
        b_spec = resident((1, Dp))
        gw_spec = resident((8, Dp))
        gb_spec = pl.BlockSpec(memory_space=pltpu.MemorySpace.SMEM)

        return pl.pallas_call(
            _mm_gated_attention_kernel,
            out_shape=out_shape,
            grid=grid,
            in_specs=[act_spec, act_spec, act_spec,
                      w_spec, b_spec, w_spec, b_spec, w_spec, b_spec,
                      gw_spec, gw_spec, gw_spec, gb_spec],
            out_specs=pl.BlockSpec((tile_n, Dp), lambda i: (i, 0)),
            compiler_params=pltpu.CompilerParams(
                dimension_semantics=("parallel",),
                vmem_limit_bytes=vmem_limit,
            ),
            cost_estimate=cost,
        )(l2, a2, v2, wl, bl, wa, ba, wv, bv, wal, wvl, wav, bg)

    try:
        out = run(True)
    except Exception:
        # pipeline_mode=pl.Buffered(...) not supported by this JAX version.
        out = run(False)

    if lane_pad:
        out = out[:, :D]
    return out.reshape(B, S, D)


def init_params(key, dim):
    """Deterministic init matching the PyTorch module's parameter shapes.
    Linear weights stored as (in, out) = transpose of nn.Linear.weight.
    Gate weights stored lane-major as (3, dim) rows [w_x, w_y, w_xy]."""
    ks = jax.random.split(key, 12)
    bound_d = 1.0 / np.sqrt(dim)
    bound_3d = 1.0 / np.sqrt(3 * dim)

    def u(k, shape, bound):
        return jax.random.uniform(k, shape, jnp.float32, -bound, bound)

    return {
        "wl": u(ks[0], (dim, dim), bound_d), "bl": u(ks[1], (1, dim), bound_d),
        "wa": u(ks[2], (dim, dim), bound_d), "ba": u(ks[3], (1, dim), bound_d),
        "wv": u(ks[4], (dim, dim), bound_d), "bv": u(ks[5], (1, dim), bound_d),
        "wal": u(ks[6], (3, dim), bound_3d), "bal": u(ks[7], (), bound_3d),
        "wvl": u(ks[8], (3, dim), bound_3d), "bvl": u(ks[9], (), bound_3d),
        "wav": u(ks[10], (3, dim), bound_3d), "bav": u(ks[11], (), bound_3d),
    }


def ref_forward(l, a, v, p):
    """Pure-JAX reference mirroring the PyTorch forward (eval mode)."""
    hl = jnp.tanh(l @ p["wl"] + p["bl"][0])
    ha = jnp.tanh(a @ p["wa"] + p["ba"][0])
    hv = jnp.tanh(v @ p["wv"] + p["bv"][0])

    def gate(x, y, w3, b):
        w = w3.reshape(-1)[:, None]          # (3*dim, 1): matches concat order
        return jax.nn.sigmoid(jnp.concatenate([x, y, x * y], -1) @ w + b)

    z_al = gate(a, l, p["wal"], p["bal"])
    h_al = z_al * ha + (1 - z_al) * hl
    z_vl = gate(v, l, p["wvl"], p["bvl"])
    h_vl = z_vl * hv + (1 - z_vl) * hl
    z_av = gate(a, v, p["wav"], p["bav"])
    h_av = z_av * ha + (1 - z_av) * hv
    return h_al + h_vl + h_av


if __name__ == "__main__":
    key = jax.random.PRNGKey(0)
    k_l, k_a, k_v, k_p, k_p2 = jax.random.split(key, 5)

    # --- Test 1: small module-consistent shape (D=32 exercises the lane-pad
    #             fallback path); f32 MXU + f32 streaming, tight tolerance.
    B, S, D = 2, 8, 32
    l = jax.random.normal(k_l, (B, S, D), jnp.float32)
    a = jax.random.normal(k_a, (B, S, D), jnp.float32)
    v = jax.random.normal(k_v, (B, S, D), jnp.float32)
    params = init_params(k_p, D)

    out = jax.block_until_ready(
        mm_gated_attention(l, a, v, params,
                           matmul_dtype=jnp.float32, act_dtype=jnp.float32))
    exp = jax.block_until_ready(ref_forward(l, a, v, params))
    assert out.shape == (B, S, D)
    np.testing.assert_allclose(np.asarray(out), np.asarray(exp),
                               rtol=1e-5, atol=1e-5)

    # --- Test 2: lane-aligned D=128 (no wrapper pad / slice copies), multi-tile
    #             token grid with a ragged last block (N=144, tile_n=64 -> 3
    #             grid steps, last block 16 valid rows).  f32 path, tight tol.
    B2, S2, D2 = 2, 72, 128
    params2 = init_params(k_p2, D2)
    l2 = jax.random.normal(jax.random.PRNGKey(1), (B2, S2, D2), jnp.float32)
    a2 = jax.random.normal(jax.random.PRNGKey(2), (B2, S2, D2), jnp.float32)
    v2 = jax.random.normal(jax.random.PRNGKey(3), (B2, S2, D2), jnp.float32)
    out2 = jax.block_until_ready(
        mm_gated_attention(l2, a2, v2, params2,
                           matmul_dtype=jnp.float32, act_dtype=jnp.float32,
                           tile_n=64))
    exp2 = jax.block_until_ready(ref_forward(l2, a2, v2, params2))
    np.testing.assert_allclose(np.asarray(out2), np.asarray(exp2),
                               rtol=1e-5, atol=1e-5)

    # --- Test 3: default fast path (bf16 MXU weights + bf16-streamed l/a/v,
    #             f32 accumulation / elementwise, auto tile), loose tolerance.
    out3 = jax.block_until_ready(mm_gated_attention(l2, a2, v2, params2))
    np.testing.assert_allclose(np.asarray(out3), np.asarray(exp2),
                               rtol=5e-2, atol=5e-2)

    print("KERNEL_OK")
</pallas_src>

<mosaic_0001>
module attributes {stable_mosaic.version = 11 : i64} {
  func.func @_mm_gated_attention_kernel(%arg0: i32, %arg1: memref<16x128xf32, #tpu.memory_space<vmem>>, %arg2: memref<16x128xf32, #tpu.memory_space<vmem>>, %arg3: memref<16x128xf32, #tpu.memory_space<vmem>>, %arg4: memref<128x128xf32, #tpu.memory_space<vmem>>, %arg5: memref<1x128xf32, #tpu.memory_space<vmem>>, %arg6: memref<128x128xf32, #tpu.memory_space<vmem>>, %arg7: memref<1x128xf32, #tpu.memory_space<vmem>>, %arg8: memref<128x128xf32, #tpu.memory_space<vmem>>, %arg9: memref<1x128xf32, #tpu.memory_space<vmem>>, %arg10: memref<8x128xf32, #tpu.memory_space<vmem>>, %arg11: memref<8x128xf32, #tpu.memory_space<vmem>>, %arg12: memref<8x128xf32, #tpu.memory_space<vmem>>, %arg13: memref<3xf32, #tpu.memory_space<smem>>, %arg14: memref<16x128xf32, #tpu.memory_space<vmem>>) attributes {dimension_semantics = [#tpu.dimension_semantics<parallel>], iteration_bounds = array<i64: 1>, scalar_prefetch = 0 : i64, scratch_operands = 0 : i64, tpu.core_type = #tpu.core_type<tc>, window_params = [{transform_indices = @transform_0, window_bounds = array<i64: 16, 128>}, {transform_indices = @transform_1, window_bounds = array<i64: 16, 128>}, {transform_indices = @transform_2, window_bounds = array<i64: 16, 128>}, {pipeline_mode = #tpu.pipeline_mode<synchronous>, transform_indices = @transform_3, window_bounds = array<i64: 128, 128>}, {pipeline_mode = #tpu.pipeline_mode<synchronous>, transform_indices = @transform_4, window_bounds = array<i64: 1, 128>}, {pipeline_mode = #tpu.pipeline_mode<synchronous>, transform_indices = @transform_5, window_bounds = array<i64: 128, 128>}, {pipeline_mode = #tpu.pipeline_mode<synchronous>, transform_indices = @transform_6, window_bounds = array<i64: 1, 128>}, {pipeline_mode = #tpu.pipeline_mode<synchronous>, transform_indices = @transform_7, window_bounds = array<i64: 128, 128>}, {pipeline_mode = #tpu.pipeline_mode<synchronous>, transform_indices = @transform_8, window_bounds = array<i64: 1, 128>}, {pipeline_mode = #tpu.pipeline_mode<synchronous>, transform_indices = @transform_9, window_bounds = array<i64: 8, 128>}, {pipeline_mode = #tpu.pipeline_mode<synchronous>, transform_indices = @transform_10, window_bounds = array<i64: 8, 128>}, {pipeline_mode = #tpu.pipeline_mode<synchronous>, transform_indices = @transform_11, window_bounds = array<i64: 8, 128>}, {transform_indices = @transform_12, window_bounds = array<i64: 3>}, {transform_indices = @transform_13, window_bounds = array<i64: 16, 128>}]} {
    %c0 = arith.constant 0 : index
    %c0_0 = arith.constant 0 : index
    %0 = vector.load %arg1[%c0, %c0_0] : memref<16x128xf32, #tpu.memory_space<vmem>>, vector<16x128xf32>
    %c0_1 = arith.constant 0 : index
    %c0_2 = arith.constant 0 : index
    %1 = vector.load %arg2[%c0_1, %c0_2] : memref<16x128xf32, #tpu.memory_space<vmem>>, vector<16x128xf32>
    %c0_3 = arith.constant 0 : index
    %c0_4 = arith.constant 0 : index
    %2 = vector.load %arg3[%c0_3, %c0_4] : memref<16x128xf32, #tpu.memory_space<vmem>>, vector<16x128xf32>
    %c0_5 = arith.constant 0 : index
    %c0_6 = arith.constant 0 : index
    %3 = vector.load %arg4[%c0_5, %c0_6] : memref<128x128xf32, #tpu.memory_space<vmem>>, vector<128x128xf32>
    %cst = arith.constant dense<0.000000e+00> : vector<16x128xf32>
    %4 = tpu.matmul %0, %3, %cst {dimension_numbers = #tpu.dot_dimension_numbers<[1], [0], [0], [1], [0, 0, 1, 1], [], []>} : vector<16x128xf32>, vector<128x128xf32>, vector<16x128xf32> -> vector<16x128xf32>
    %c0_7 = arith.constant 0 : index
    %c0_8 = arith.constant 0 : index
    %5 = vector.load %arg5[%c0_7, %c0_8] : memref<1x128xf32, #tpu.memory_space<vmem>>, vector<1x128xf32>
    %6 = vector.broadcast %5 : vector<1x128xf32> to vector<16x128xf32>
    %7 = arith.addf %4, %6 : vector<16x128xf32>
    %8 = math.tanh %7 : vector<16x128xf32>
    %c0_9 = arith.constant 0 : index
    %c0_10 = arith.constant 0 : index
    %9 = vector.load %arg6[%c0_9, %c0_10] : memref<128x128xf32, #tpu.memory_space<vmem>>, vector<128x128xf32>
    %cst_11 = arith.constant dense<0.000000e+00> : vector<16x128xf32>
    %10 = tpu.matmul %1, %9, %cst_11 {dimension_numbers = #tpu.dot_dimension_numbers<[1], [0], [0], [1], [0, 0, 1, 1], [], []>} : vector<16x128xf32>, vector<128x128xf32>, vector<16x128xf32> -> vector<16x128xf32>
    %c0_12 = arith.constant 0 : index
    %c0_13 = arith.constant 0 : index
    %11 = vector.load %arg7[%c0_12, %c0_13] : memref<1x128xf32, #tpu.memory_space<vmem>>, vector<1x128xf32>
    %12 = vector.broadcast %11 : vector<1x128xf32> to vector<16x128xf32>
    %13 = arith.addf %10, %12 : vector<16x128xf32>
    %14 = math.tanh %13 : vector<16x128xf32>
    %c0_14 = arith.constant 0 : index
    %c0_15 = arith.constant 0 : index
    %15 = vector.load %arg8[%c0_14, %c0_15] : memref<128x128xf32, #tpu.memory_space<vmem>>, vector<128x128xf32>
    %cst_16 = arith.constant dense<0.000000e+00> : vector<16x128xf32>
    %16 = tpu.matmul %2, %15, %cst_16 {dimension_numbers = #tpu.dot_dimension_numbers<[1], [0], [0], [1], [0, 0, 1, 1], [], []>} : vector<16x128xf32>, vector<128x128xf32>, vector<16x128xf32> -> vector<16x128xf32>
    %c0_17 = arith.constant 0 : index
    %c0_18 = arith.constant 0 : index
    %17 = vector.load %arg9[%c0_17, %c0_18] : memref<1x128xf32, #tpu.memory_space<vmem>>, vector<1x128xf32>
    %18 = vector.broadcast %17 : vector<1x128xf32> to vector<16x128xf32>
    %19 = arith.addf %16, %18 : vector<16x128xf32>
    %20 = math.tanh %19 : vector<16x128xf32>
    %c0_19 = arith.constant 0 : index
    %21 = memref.load %arg13[%c0_19] : memref<3xf32, #tpu.memory_space<smem>>
    %c0_20 = arith.constant 0 : index
    %c0_21 = arith.constant 0 : index
    %22 = vector.load %arg10[%c0_20, %c0_21] : memref<8x128xf32, #tpu.memory_space<vmem>>, vector<1x128xf32>
    %c1 = arith.constant 1 : index
    %c0_22 = arith.constant 0 : index
    %23 = vector.load %arg10[%c1, %c0_22] : memref<8x128xf32, #tpu.memory_space<vmem>>, vector<1x128xf32>
    %c2 = arith.constant 2 : index
    %c0_23 = arith.constant 0 : index
    %24 = vector.load %arg10[%c2, %c0_23] : memref<8x128xf32, #tpu.memory_space<vmem>>, vector<1x128xf32>
    %25 = vector.broadcast %22 : vector<1x128xf32> to vector<16x128xf32>
    %26 = arith.mulf %1, %25 : vector<16x128xf32>
    %27 = vector.broadcast %23 : vector<1x128xf32> to vector<16x128xf32>
    %28 = arith.mulf %0, %27 : vector<16x128xf32>
    %29 = arith.addf %26, %28 : vector<16x128xf32>
    %30 = arith.mulf %1, %0 : vector<16x128xf32>
    %31 = vector.broadcast %24 : vector<1x128xf32> to vector<16x128xf32>
    %32 = arith.mulf %30, %31 : vector<16x128xf32>
    %33 = arith.addf %29, %32 : vector<16x128xf32>
    %cst_24 = arith.constant dense<0.000000e+00> : vector<16xf32>
    %34 = vector.multi_reduction <add>, %33, %cst_24 [1] : vector<16x128xf32> to vector<16xf32>
    %35 = vector.shape_cast %34 : vector<16xf32> to vector<16x1xf32>
    %36 = vector.broadcast %21 : f32 to vector<16x1xf32>
    %37 = arith.addf %35, %36 : vector<16x1xf32>
    %38 = arith.negf %37 : vector<16x1xf32>
    %39 = math.exp %38 : vector<16x1xf32>
    %cst_25 = arith.constant 1.000000e+00 : f32
    %40 = vector.broadcast %cst_25 : f32 to vector<16x1xf32>
    %41 = arith.addf %40, %39 : vector<16x1xf32>
    %42 = arith.divf %40, %41 : vector<16x1xf32>
    %c1_26 = arith.constant 1 : index
    %43 = memref.load %arg13[%c1_26] : memref<3xf32, #tpu.memory_space<smem>>
    %c0_27 = arith.constant 0 : index
    %c0_28 = arith.constant 0 : index
    %44 = vector.load %arg11[%c0_27, %c0_28] : memref<8x128xf32, #tpu.memory_space<vmem>>, vector<1x128xf32>
    %c1_29 = arith.constant 1 : index
    %c0_30 = arith.constant 0 : index
    %45 = vector.load %arg11[%c1_29, %c0_30] : memref<8x128xf32, #tpu.memory_space<vmem>>, vector<1x128xf32>
    %c2_31 = arith.constant 2 : index
    %c0_32 = arith.constant 0 : index
    %46 = vector.load %arg11[%c2_31, %c0_32] : memref<8x128xf32, #tpu.memory_space<vmem>>, vector<1x128xf32>
    %47 = vector.broadcast %44 : vector<1x128xf32> to vector<16x128xf32>
    %48 = arith.mulf %2, %47 : vector<16x128xf32>
    %49 = vector.broadcast %45 : vector<1x128xf32> to vector<16x128xf32>
    %50 = arith.mulf %0, %49 : vector<16x128xf32>
    %51 = arith.addf %48, %50 : vector<16x128xf32>
    %52 = arith.mulf %2, %0 : vector<16x128xf32>
    %53 = vector.broadcast %46 : vector<1x128xf32> to vector<16x128xf32>
    %54 = arith.mulf %52, %53 : vector<16x128xf32>
    %55 = arith.addf %51, %54 : vector<16x128xf32>
    %cst_33 = arith.constant dense<0.000000e+00> : vector<16xf32>
    %56 = vector.multi_reduction <add>, %55, %cst_33 [1] : vector<16x128xf32> to vector<16xf32>
    %57 = vector.shape_cast %56 : vector<16xf32> to vector<16x1xf32>
    %58 = vector.broadcast %43 : f32 to vector<16x1xf32>
    %59 = arith.addf %57, %58 : vector<16x1xf32>
    %60 = arith.negf %59 : vector<16x1xf32>
    %61 = math.exp %60 : vector<16x1xf32>
    %cst_34 = arith.constant 1.000000e+00 : f32
    %62 = vector.broadcast %cst_34 : f32 to vector<16x1xf32>
    %63 = arith.addf %62, %61 : vector<16x1xf32>
    %64 = arith.divf %62, %63 : vector<16x1xf32>
    %c2_35 = arith.constant 2 : index
    %65 = memref.load %arg13[%c2_35] : memref<3xf32, #tpu.memory_space<smem>>
    %c0_36 = arith.constant 0 : index
    %c0_37 = arith.constant 0 : index
    %66 = vector.load %arg12[%c0_36, %c0_37] : memref<8x128xf32, #tpu.memory_space<vmem>>, vector<1x128xf32>
    %c1_38 = arith.constant 1 : index
    %c0_39 = arith.constant 0 : index
    %67 = vector.load %arg12[%c1_38, %c0_39] : memref<8x128xf32, #tpu.memory_space<vmem>>, vector<1x128xf32>
    %c2_40 = arith.constant 2 : index
    %c0_41 = arith.constant 0 : index
    %68 = vector.load %arg12[%c2_40, %c0_41] : memref<8x128xf32, #tpu.memory_space<vmem>>, vector<1x128xf32>
    %69 = vector.broadcast %66 : vector<1x128xf32> to vector<16x128xf32>
    %70 = arith.mulf %1, %69 : vector<16x128xf32>
    %71 = vector.broadcast %67 : vector<1x128xf32> to vector<16x128xf32>
    %72 = arith.mulf %2, %71 : vector<16x128xf32>
    %73 = arith.addf %70, %72 : vector<16x128xf32>
    %74 = arith.mulf %1, %2 : vector<16x128xf32>
    %75 = vector.broadcast %68 : vector<1x128xf32> to vector<16x128xf32>
    %76 = arith.mulf %74, %75 : vector<16x128xf32>
    %77 = arith.addf %73, %76 : vector<16x128xf32>
    %cst_42 = arith.constant dense<0.000000e+00> : vector<16xf32>
    %78 = vector.multi_reduction <add>, %77, %cst_42 [1] : vector<16x128xf32> to vector<16xf32>
    %79 = vector.shape_cast %78 : vector<16xf32> to vector<16x1xf32>
    %80 = vector.broadcast %65 : f32 to vector<16x1xf32>
    %81 = arith.addf %79, %80 : vector<16x1xf32>
    %82 = arith.negf %81 : vector<16x1xf32>
    %83 = math.exp %82 : vector<16x1xf32>
    %cst_43 = arith.constant 1.000000e+00 : f32
    %84 = vector.broadcast %cst_43 : f32 to vector<16x1xf32>
    %85 = arith.addf %84, %83 : vector<16x1xf32>
    %86 = arith.divf %84, %85 : vector<16x1xf32>
    %cst_44 = arith.constant 2.000000e+00 : f32
    %87 = vector.broadcast %cst_44 : f32 to vector<16x1xf32>
    %88 = arith.subf %87, %42 : vector<16x1xf32>
    %89 = arith.subf %88, %64 : vector<16x1xf32>
    %90 = vector.broadcast %89 : vector<16x1xf32> to vector<16x128xf32>
    %91 = arith.mulf %90, %8 : vector<16x128xf32>
    %92 = arith.addf %42, %86 : vector<16x1xf32>
    %93 = vector.broadcast %92 : vector<16x1xf32> to vector<16x128xf32>
    %94 = arith.mulf %93, %14 : vector<16x128xf32>
    %95 = arith.addf %91, %94 : vector<16x128xf32>
    %cst_45 = arith.constant 1.000000e+00 : f32
    %96 = vector.broadcast %cst_45 : f32 to vector<16x1xf32>
    %97 = arith.addf %96, %64 : vector<16x1xf32>
    %98 = arith.subf %97, %86 : vector<16x1xf32>
    %99 = vector.broadcast %98 : vector<16x1xf32> to vector<16x128xf32>
    %100 = arith.mulf %99, %20 : vector<16x128xf32>
    %101 = arith.addf %95, %100 : vector<16x128xf32>
    %c0_46 = arith.constant 0 : index
    %c0_47 = arith.constant 0 : index
    %102 = vector.load %arg14[%c0_46, %c0_47] : memref<16x128xf32, #tpu.memory_space<vmem>>, vector<16x128xf32>
    tpu.vector_store %arg14[%c0_46, %c0_47], %101 {strides = array<i32>} : memref<16x128xf32, #tpu.memory_space<vmem>>, vector<16x128xf32>,
    return
  }
  func.func @transform_0(%arg0: i32) -> (i32, i32) {
    %c0_i32 = arith.constant 0 : i32
    %c0_i32_0 = arith.constant 0 : i32
    return %arg0, %c0_i32 : i32, i32
  }
  func.func @transform_1(%arg0: i32) -> (i32, i32) {
    %c0_i32 = arith.constant 0 : i32
    %c0_i32_0 = arith.constant 0 : i32
    return %arg0, %c0_i32 : i32, i32
  }
  func.func @transform_2(%arg0: i32) -> (i32, i32) {
    %c0_i32 = arith.constant 0 : i32
    %c0_i32_0 = arith.constant 0 : i32
    return %arg0, %c0_i32 : i32, i32
  }
  func.func @transform_3(%arg0: i32) -> (i32, i32) {
    %c0_i32 = arith.constant 0 : i32
    %c0_i32_0 = arith.constant 0 : i32
    %c0_i32_1 = arith.constant 0 : i32
    return %c0_i32, %c0_i32_0 : i32, i32
  }
  func.func @transform_4(%arg0: i32) -> (i32, i32) {
    %c0_i32 = arith.constant 0 : i32
    %c0_i32_0 = arith.constant 0 : i32
    %c0_i32_1 = arith.constant 0 : i32
    return %c0_i32, %c0_i32_0 : i32, i32
  }
  func.func @transform_5(%arg0: i32) -> (i32, i32) {
    %c0_i32 = arith.constant 0 : i32
    %c0_i32_0 = arith.constant 0 : i32
    %c0_i32_1 = arith.constant 0 : i32
    return %c0_i32, %c0_i32_0 : i32, i32
  }
  func.func @transform_6(%arg0: i32) -> (i32, i32) {
    %c0_i32 = arith.constant 0 : i32
    %c0_i32_0 = arith.constant 0 : i32
    %c0_i32_1 = arith.constant 0 : i32
    return %c0_i32, %c0_i32_0 : i32, i32
  }
  func.func @transform_7(%arg0: i32) -> (i32, i32) {
    %c0_i32 = arith.constant 0 : i32
    %c0_i32_0 = arith.constant 0 : i32
    %c0_i32_1 = arith.constant 0 : i32
    return %c0_i32, %c0_i32_0 : i32, i32
  }
  func.func @transform_8(%arg0: i32) -> (i32, i32) {
    %c0_i32 = arith.constant 0 : i32
    %c0_i32_0 = arith.constant 0 : i32
    %c0_i32_1 = arith.constant 0 : i32
    return %c0_i32, %c0_i32_0 : i32, i32
  }
  func.func @transform_9(%arg0: i32) -> (i32, i32) {
    %c0_i32 = arith.constant 0 : i32
    %c0_i32_0 = arith.constant 0 : i32
    %c0_i32_1 = arith.constant 0 : i32
    return %c0_i32, %c0_i32_0 : i32, i32
  }
  func.func @transform_10(%arg0: i32) -> (i32, i32) {
    %c0_i32 = arith.constant 0 : i32
    %c0_i32_0 = arith.constant 0 : i32
    %c0_i32_1 = arith.constant 0 : i32
    return %c0_i32, %c0_i32_0 : i32, i32
  }
  func.func @transform_11(%arg0: i32) -> (i32, i32) {
    %c0_i32 = arith.constant 0 : i32
    %c0_i32_0 = arith.constant 0 : i32
    %c0_i32_1 = arith.constant 0 : i32
    return %c0_i32, %c0_i32_0 : i32, i32
  }
  func.func @transform_12(%arg0: i32) -> i32 {
    %c0_i32 = arith.constant 0 : i32
    %c0_i32_0 = arith.constant 0 : i32
    return %c0_i32 : i32
  }
  func.func @transform_13(%arg0: i32) -> (i32, i32) {
    %c0_i32 = arith.constant 0 : i32
    %c0_i32_0 = arith.constant 0 : i32
    return %arg0, %c0_i32 : i32, i32
  }
}

module attributes {stable_mosaic.version = 11 : i64} {
  func.func @_mm_gated_attention_kernel(%arg0: i32, %arg1: memref<16x128xf32, #tpu.memory_space<vmem>>, %arg2: memref<16x128xf32, #tpu.memory_space<vmem>>, %arg3: memref<16x128xf32, #tpu.memory_space<vmem>>, %arg4: memref<128x128xf32, #tpu.memory_space<vmem>>, %arg5: memref<1x128xf32, #tpu.memory_space<vmem>>, %arg6: memref<128x128xf32, #tpu.memory_space<vmem>>, %arg7: memref<1x128xf32, #tpu.memory_space<vmem>>, %arg8: memref<128x128xf32, #tpu.memory_space<vmem>>, %arg9: memref<1x128xf32, #tpu.memory_space<vmem>>, %arg10: memref<8x128xf32, #tpu.memory_space<vmem>>, %arg11: memref<8x128xf32, #tpu.memory_space<vmem>>, %arg12: memref<8x128xf32, #tpu.memory_space<vmem>>, %arg13: memref<3xf32, #tpu.memory_space<smem>>, %arg14: memref<16x128xf32, #tpu.memory_space<vmem>>) attributes {dimension_semantics = [#tpu.dimension_semantics<parallel>], iteration_bounds = array<i64: 1>, scalar_prefetch = 0 : i64, scratch_operands = 0 : i64, tpu.core_type = #tpu.core_type<tc>, window_params = [{transform_indices = @transform_0, window_bounds = array<i64: 16, 128>}, {transform_indices = @transform_1, window_bounds = array<i64: 16, 128>}, {transform_indices = @transform_2, window_bounds = array<i64: 16, 128>}, {pipeline_mode = #tpu.pipeline_mode<synchronous>, transform_indices = @transform_3, window_bounds = array<i64: 128, 128>}, {pipeline_mode = #tpu.pipeline_mode<synchronous>, transform_indices = @transform_4, window_bounds = array<i64: 1, 128>}, {pipeline_mode = #tpu.pipeline_mode<synchronous>, transform_indices = @transform_5, window_bounds = array<i64: 128, 128>}, {pipeline_mode = #tpu.pipeline_mode<synchronous>, transform_indices = @transform_6, window_bounds = array<i64: 1, 128>}, {pipeline_mode = #tpu.pipeline_mode<synchronous>, transform_indices = @transform_7, window_bounds = array<i64: 128, 128>}, {pipeline_mode = #tpu.pipeline_mode<synchronous>, transform_indices = @transform_8, window_bounds = array<i64: 1, 128>}, {pipeline_mode = #tpu.pipeline_mode<synchronous>, transform_indices = @transform_9, window_bounds = array<i64: 8, 128>}, {pipeline_mode = #tpu.pipeline_mode<synchronous>, transform_indices = @transform_10, window_bounds = array<i64: 8, 128>}, {pipeline_mode = #tpu.pipeline_mode<synchronous>, transform_indices = @transform_11, window_bounds = array<i64: 8, 128>}, {transform_indices = @transform_12, window_bounds = array<i64: 3>}, {transform_indices = @transform_13, window_bounds = array<i64: 16, 128>}]} {
    %c0 = arith.constant 0 : index
    %c0_0 = arith.constant 0 : index
    %0 = vector.load %arg1[%c0, %c0_0] : memref<16x128xf32, #tpu.memory_space<vmem>>, vector<16x128xf32>
    %c0_1 = arith.constant 0 : index
    %c0_2 = arith.constant 0 : index
    %1 = vector.load %arg2[%c0_1, %c0_2] : memref<16x128xf32, #tpu.memory_space<vmem>>, vector<16x128xf32>
    %c0_3 = arith.constant 0 : index
    %c0_4 = arith.constant 0 : index
    %2 = vector.load %arg3[%c0_3, %c0_4] : memref<16x128xf32, #tpu.memory_space<vmem>>, vector<16x128xf32>
    %c0_5 = arith.constant 0 : index
    %c0_6 = arith.constant 0 : index
    %3 = vector.load %arg4[%c0_5, %c0_6] : memref<128x128xf32, #tpu.memory_space<vmem>>, vector<128x128xf32>
    %cst = arith.constant dense<0.000000e+00> : vector<16x128xf32>
    %4 = tpu.matmul %0, %3, %cst {dimension_numbers = #tpu.dot_dimension_numbers<[1], [0], [0], [1], [0, 0, 1, 1], [], []>} : vector<16x128xf32>, vector<128x128xf32>, vector<16x128xf32> -> vector<16x128xf32>
    %c0_7 = arith.constant 0 : index
    %c0_8 = arith.constant 0 : index
    %5 = vector.load %arg5[%c0_7, %c0_8] : memref<1x128xf32, #tpu.memory_space<vmem>>, vector<1x128xf32>
    %6 = vector.broadcast %5 : vector<1x128xf32> to vector<16x128xf32>
    %7 = arith.addf %4, %6 : vector<16x128xf32>
    %8 = math.tanh %7 : vector<16x128xf32>
    %c0_9 = arith.constant 0 : index
    %c0_10 = arith.constant 0 : index
    %9 = vector.load %arg6[%c0_9, %c0_10] : memref<128x128xf32, #tpu.memory_space<vmem>>, vector<128x128xf32>
    %cst_11 = arith.constant dense<0.000000e+00> : vector<16x128xf32>
    %10 = tpu.matmul %1, %9, %cst_11 {dimension_numbers = #tpu.dot_dimension_numbers<[1], [0], [0], [1], [0, 0, 1, 1], [], []>} : vector<16x128xf32>, vector<128x128xf32>, vector<16x128xf32> -> vector<16x128xf32>
    %c0_12 = arith.constant 0 : index
    %c0_13 = arith.constant 0 : index
    %11 = vector.load %arg7[%c0_12, %c0_13] : memref<1x128xf32, #tpu.memory_space<vmem>>, vector<1x128xf32>
    %12 = vector.broadcast %11 : vector<1x128xf32> to vector<16x128xf32>
    %13 = arith.addf %10, %12 : vector<16x128xf32>
    %14 = math.tanh %13 : vector<16x128xf32>
    %c0_14 = arith.constant 0 : index
    %c0_15 = arith.constant 0 : index
    %15 = vector.load %arg8[%c0_14, %c0_15] : memref<128x128xf32, #tpu.memory_space<vmem>>, vector<128x128xf32>
    %cst_16 = arith.constant dense<0.000000e+00> : vector<16x128xf32>
    %16 = tpu.matmul %2, %15, %cst_16 {dimension_numbers = #tpu.dot_dimension_numbers<[1], [0], [0], [1], [0, 0, 1, 1], [], []>} : vector<16x128xf32>, vector<128x128xf32>, vector<16x128xf32> -> vector<16x128xf32>
    %c0_17 = arith.constant 0 : index
    %c0_18 = arith.constant 0 : index
    %17 = vector.load %arg9[%c0_17, %c0_18] : memref<1x128xf32, #tpu.memory_space<vmem>>, vector<1x128xf32>
    %18 = vector.broadcast %17 : vector<1x128xf32> to vector<16x128xf32>
    %19 = arith.addf %16, %18 : vector<16x128xf32>
    %20 = math.tanh %19 : vector<16x128xf32>
    %c0_19 = arith.constant 0 : index
    %21 = memref.load %arg13[%c0_19] : memref<3xf32, #tpu.memory_space<smem>>
    %c0_20 = arith.constant 0 : index
    %c0_21 = arith.constant 0 : index
    %22 = vector.load %arg10[%c0_20, %c0_21] : memref<8x128xf32, #tpu.memory_space<vmem>>, vector<1x128xf32>
    %c1 = arith.constant 1 : index
    %c0_22 = arith.constant 0 : index
    %23 = vector.load %arg10[%c1, %c0_22] : memref<8x128xf32, #tpu.memory_space<vmem>>, vector<1x128xf32>
    %c2 = arith.constant 2 : index
    %c0_23 = arith.constant 0 : index
    %24 = vector.load %arg10[%c2, %c0_23] : memref<8x128xf32, #tpu.memory_space<vmem>>, vector<1x128xf32>
    %25 = vector.broadcast %22 : vector<1x128xf32> to vector<16x128xf32>
    %26 = arith.mulf %1, %25 : vector<16x128xf32>
    %27 = vector.broadcast %23 : vector<1x128xf32> to vector<16x128xf32>
    %28 = arith.mulf %0, %27 : vector<16x128xf32>
    %29 = arith.addf %26, %28 : vector<16x128xf32>
    %30 = arith.mulf %1, %0 : vector<16x128xf32>
    %31 = vector.broadcast %24 : vector<1x128xf32> to vector<16x128xf32>
    %32 = arith.mulf %30, %31 : vector<16x128xf32>
    %33 = arith.addf %29, %32 : vector<16x128xf32>
    %cst_24 = arith.constant dense<0.000000e+00> : vector<16xf32>
    %34 = vector.multi_reduction <add>, %33, %cst_24 [1] : vector<16x128xf32> to vector<16xf32>
    %35 = vector.shape_cast %34 : vector<16xf32> to vector<16x1xf32>
    %36 = vector.broadcast %21 : f32 to vector<16x1xf32>
    %37 = arith.addf %35, %36 : vector<16x1xf32>
    %38 = arith.negf %37 : vector<16x1xf32>
    %39 = math.exp %38 : vector<16x1xf32>
    %cst_25 = arith.constant 1.000000e+00 : f32
    %40 = vector.broadcast %cst_25 : f32 to vector<16x1xf32>
    %41 = arith.addf %40, %39 : vector<16x1xf32>
    %42 = arith.divf %40, %41 : vector<16x1xf32>
    %c1_26 = arith.constant 1 : index
    %43 = memref.load %arg13[%c1_26] : memref<3xf32, #tpu.memory_space<smem>>
    %c0_27 = arith.constant 0 : index
    %c0_28 = arith.constant 0 : index
    %44 = vector.load %arg11[%c0_27, %c0_28] : memref<8x128xf32, #tpu.memory_space<vmem>>, vector<1x128xf32>
    %c1_29 = arith.constant 1 : index
    %c0_30 = arith.constant 0 : index
    %45 = vector.load %arg11[%c1_29, %c0_30] : memref<8x128xf32, #tpu.memory_space<vmem>>, vector<1x128xf32>
    %c2_31 = arith.constant 2 : index
    %c0_32 = arith.constant 0 : index
    %46 = vector.load %arg11[%c2_31, %c0_32] : memref<8x128xf32, #tpu.memory_space<vmem>>, vector<1x128xf32>
    %47 = vector.broadcast %44 : vector<1x128xf32> to vector<16x128xf32>
    %48 = arith.mulf %2, %47 : vector<16x128xf32>
    %49 = vector.broadcast %45 : vector<1x128xf32> to vector<16x128xf32>
    %50 = arith.mulf %0, %49 : vector<16x128xf32>
    %51 = arith.addf %48, %50 : vector<16x128xf32>
    %52 = arith.mulf %2, %0 : vector<16x128xf32>
    %53 = vector.broadcast %46 : vector<1x128xf32> to vector<16x128xf32>
    %54 = arith.mulf %52, %53 : vector<16x128xf32>
    %55 = arith.addf %51, %54 : vector<16x128xf32>
    %cst_33 = arith.constant dense<0.000000e+00> : vector<16xf32>
    %56 = vector.multi_reduction <add>, %55, %cst_33 [1] : vector<16x128xf32> to vector<16xf32>
    %57 = vector.shape_cast %56 : vector<16xf32> to vector<16x1xf32>
    %58 = vector.broadcast %43 : f32 to vector<16x1xf32>
    %59 = arith.addf %57, %58 : vector<16x1xf32>
    %60 = arith.negf %59 : vector<16x1xf32>
    %61 = math.exp %60 : vector<16x1xf32>
    %cst_34 = arith.constant 1.000000e+00 : f32
    %62 = vector.broadcast %cst_34 : f32 to vector<16x1xf32>
    %63 = arith.addf %62, %61 : vector<16x1xf32>
    %64 = arith.divf %62, %63 : vector<16x1xf32>
    %c2_35 = arith.constant 2 : index
    %65 = memref.load %arg13[%c2_35] : memref<3xf32, #tpu.memory_space<smem>>
    %c0_36 = arith.constant 0 : index
    %c0_37 = arith.constant 0 : index
    %66 = vector.load %arg12[%c0_36, %c0_37] : memref<8x128xf32, #tpu.memory_space<vmem>>, vector<1x128xf32>
    %c1_38 = arith.constant 1 : index
    %c0_39 = arith.constant 0 : index
    %67 = vector.load %arg12[%c1_38, %c0_39] : memref<8x128xf32, #tpu.memory_space<vmem>>, vector<1x128xf32>
    %c2_40 = arith.constant 2 : index
    %c0_41 = arith.constant 0 : index
    %68 = vector.load %arg12[%c2_40, %c0_41] : memref<8x128xf32, #tpu.memory_space<vmem>>, vector<1x128xf32>
    %69 = vector.broadcast %66 : vector<1x128xf32> to vector<16x128xf32>
    %70 = arith.mulf %1, %69 : vector<16x128xf32>
    %71 = vector.broadcast %67 : vector<1x128xf32> to vector<16x128xf32>
    %72 = arith.mulf %2, %71 : vector<16x128xf32>
    %73 = arith.addf %70, %72 : vector<16x128xf32>
    %74 = arith.mulf %1, %2 : vector<16x128xf32>
    %75 = vector.broadcast %68 : vector<1x128xf32> to vector<16x128xf32>
    %76 = arith.mulf %74, %75 : vector<16x128xf32>
    %77 = arith.addf %73, %76 : vector<16x128xf32>
    %cst_42 = arith.constant dense<0.000000e+00> : vector<16xf32>
    %78 = vector.multi_reduction <add>, %77, %cst_42 [1] : vector<16x128xf32> to vector<16xf32>
    %79 = vector.shape_cast %78 : vector<16xf32> to vector<16x1xf32>
    %80 = vector.broadcast %65 : f32 to vector<16x1xf32>
    %81 = arith.addf %79, %80 : vector<16x1xf32>
    %82 = arith.negf %81 : vector<16x1xf32>
    %83 = math.exp %82 : vector<16x1xf32>
    %cst_43 = arith.constant 1.000000e+00 : f32
    %84 = vector.broadcast %cst_43 : f32 to vector<16x1xf32>
    %85 = arith.addf %84, %83 : vector<16x1xf32>
    %86 = arith.divf %84, %85 : vector<16x1xf32>
    %cst_44 = arith.constant 2.000000e+00 : f32
    %87 = vector.broadcast %cst_44 : f32 to vector<16x1xf32>
    %88 = arith.subf %87, %42 : vector<16x1xf32>
    %89 = arith.subf %88, %64 : vector<16x1xf32>
    %90 = vector.broadcast %89 : vector<16x1xf32> to vector<16x128xf32>
    %91 = arith.mulf %90, %8 : vector<16x128xf32>
    %92 = arith.addf %42, %86 : vector<16x1xf32>
    %93 = vector.broadcast %92 : vector<16x1xf32> to vector<16x128xf32>
    %94 = arith.mulf %93, %14 : vector<16x128xf32>
    %95 = arith.addf %91, %94 : vector<16x128xf32>
    %cst_45 = arith.constant 1.000000e+00 : f32
    %96 = vector.broadcast %cst_45 : f32 to vector<16x1xf32>
    %97 = arith.addf %96, %64 : vector<16x1xf32>
    %98 = arith.subf %97, %86 : vector<16x1xf32>
    %99 = vector.broadcast %98 : vector<16x1xf32> to vector<16x128xf32>
    %100 = arith.mulf %99, %20 : vector<16x128xf32>
    %101 = arith.addf %95, %100 : vector<16x128xf32>
    %c0_46 = arith.constant 0 : index
    %c0_47 = arith.constant 0 : index
    %102 = vector.load %arg14[%c0_46, %c0_47] : memref<16x128xf32, #tpu.memory_space<vmem>>, vector<16x128xf32>
    tpu.vector_store %arg14[%c0_46, %c0_47], %101 {strides = array<i32>} : memref<16x128xf32, #tpu.memory_space<vmem>>, vector<16x128xf32>,
    return
  }
  func.func @transform_0(%arg0: i32) -> (i32, i32) {
    %c0_i32 = arith.constant 0 : i32
    %c0_i32_0 = arith.constant 0 : i32
    return %arg0, %c0_i32 : i32, i32
  }
  func.func @transform_1(%arg0: i32) -> (i32, i32) {
    %c0_i32 = arith.constant 0 : i32
    %c0_i32_0 = arith.constant 0 : i32
    return %arg0, %c0_i32 : i32, i32
  }
  func.func @transform_2(%arg0: i32) -> (i32, i32) {
    %c0_i32 = arith.constant 0 : i32
    %c0_i32_0 = arith.constant 0 : i32
    return %arg0, %c0_i32 : i32, i32
  }
  func.func @transform_3(%arg0: i32) -> (i32, i32) {
    %c0_i32 = arith.constant 0 : i32
    %c0_i32_0 = arith.constant 0 : i32
    %c0_i32_1 = arith.constant 0 : i32
    return %c0_i32, %c0_i32_0 : i32, i32
  }
  func.func @transform_4(%arg0: i32) -> (i32, i32) {
    %c0_i32 = arith.constant 0 : i32
    %c0_i32_0 = arith.constant 0 : i32
    %c0_i32_1 = arith.constant 0 : i32
    return %c0_i32, %c0_i32_0 : i32, i32
  }
  func.func @transform_5(%arg0: i32) -> (i32, i32) {
    %c0_i32 = arith.constant 0 : i32
    %c0_i32_0 = arith.constant 0 : i32
    %c0_i32_1 = arith.constant 0 : i32
    return %c0_i32, %c0_i32_0 : i32, i32
  }
  func.func @transform_6(%arg0: i32) -> (i32, i32) {
    %c0_i32 = arith.constant 0 : i32
    %c0_i32_0 = arith.constant 0 : i32
    %c0_i32_1 = arith.constant 0 : i32
    return %c0_i32, %c0_i32_0 : i32, i32
  }
  func.func @transform_7(%arg0: i32) -> (i32, i32) {
    %c0_i32 = arith.constant 0 : i32
    %c0_i32_0 = arith.constant 0 : i32
    %c0_i32_1 = arith.constant 0 : i32
    return %c0_i32, %c0_i32_0 : i32, i32
  }
  func.func @transform_8(%arg0: i32) -> (i32, i32) {
    %c0_i32 = arith.constant 0 : i32
    %c0_i32_0 = arith.constant 0 : i32
    %c0_i32_1 = arith.constant 0 : i32
    return %c0_i32, %c0_i32_0 : i32, i32
  }
  func.func @transform_9(%arg0: i32) -> (i32, i32) {
    %c0_i32 = arith.constant 0 : i32
    %c0_i32_0 = arith.constant 0 : i32
    %c0_i32_1 = arith.constant 0 : i32
    return %c0_i32, %c0_i32_0 : i32, i32
  }
  func.func @transform_10(%arg0: i32) -> (i32, i32) {
    %c0_i32 = arith.constant 0 : i32
    %c0_i32_0 = arith.constant 0 : i32
    %c0_i32_1 = arith.constant 0 : i32
    return %c0_i32, %c0_i32_0 : i32, i32
  }
  func.func @transform_11(%arg0: i32) -> (i32, i32) {
    %c0_i32 = arith.constant 0 : i32
    %c0_i32_0 = arith.constant 0 : i32
    %c0_i32_1 = arith.constant 0 : i32
    return %c0_i32, %c0_i32_0 : i32, i32
  }
  func.func @transform_12(%arg0: i32) -> i32 {
    %c0_i32 = arith.constant 0 : i32
    %c0_i32_0 = arith.constant 0 : i32
    return %c0_i32 : i32
  }
  func.func @transform_13(%arg0: i32) -> (i32, i32) {
    %c0_i32 = arith.constant 0 : i32
    %c0_i32_0 = arith.constant 0 : i32
    return %arg0, %c0_i32 : i32, i32
  }
}

</mosaic_0001>

<llo_original>
// kernel: tpu_custom_call.1
$region0: #{tpu_custom_call.1}
  #allocation0 [shape = 'u32[]', space=smem, size = 0x4, offset = 0x4, fixed_abs, tag = 'smem constant byte address 0x4 - core index']
  #allocation1 [shape = 'u32[144,128]{1,0:T(1,128)}', space=vmem, size = 0x12000, scoped, tag = 'internal scratch']
  %s0 = inlined_call_operand.hbm [shape: f32[16,128], index: 0, kind: input, shape index: {}]
  %s1 = inlined_call_operand.hbm [shape: f32[16,128], index: 1, kind: input, shape index: {}]
  %s2 = inlined_call_operand.hbm [shape: f32[16,128], index: 2, kind: input, shape index: {}]
  %s3 = inlined_call_operand.hbm [shape: f32[128,128], index: 3, kind: input, shape index: {}]
  %s4 = inlined_call_operand.vmem [shape: f32[1,128], index: 4, kind: input, shape index: {}]
  %s5 = inlined_call_operand.hbm [shape: f32[128,128], index: 5, kind: input, shape index: {}]
  %s6 = inlined_call_operand.vmem [shape: f32[1,128], index: 6, kind: input, shape index: {}]
  %s7 = inlined_call_operand.hbm [shape: f32[128,128], index: 7, kind: input, shape index: {}]
  %s8 = inlined_call_operand.vmem [shape: f32[1,128], index: 8, kind: input, shape index: {}]
  %s9 = inlined_call_operand.vmem [shape: f32[8,128], index: 9, kind: input, shape index: {}]
  %s10 = inlined_call_operand.vmem [shape: f32[8,128], index: 10, kind: input, shape index: {}]
  %s11 = inlined_call_operand.vmem [shape: f32[8,128], index: 11, kind: input, shape index: {}]
  %s12 = inlined_call_operand.vmem [shape: f32[3], index: 12, kind: input, shape index: {}]
  %s13 = inlined_call_operand.hbm [shape: f32[16,128], index: 13, kind: output, shape index: {}]
  %s14 = sld [smem:[#allocation0]]
  $region90: #{tpu_custom_call.1} parent=0
    _
  %s16 = ssub.s32 1, %s14
  %s17 = scalar_select 0, %s16, %s14
  $region1: #{tpu_custom_call.1} parent=0
    #allocation2 [shape = 'u8[8192]{0}', space=vmem, size = 0x2000, scoped, tag = 'input window, operand 0, single buffered']
    #allocation3 [shape = 's32[1]{0}', space=sflag, size = 0x4, scoped, tag = 'scoped memory for tpu_custom_call.1']
    #allocation4 [shape = 's32[1]{0}', space=sflag, size = 0x4, scoped, tag = 'scoped memory for tpu_custom_call.1']
    #allocation5 [shape = 's32[1]{0}', space=sflag, size = 0x4, scoped, tag = 'scoped memory for tpu_custom_call.1']
    #allocation6 [shape = 'u8[8192]{0}', space=vmem, size = 0x2000, scoped, tag = 'input window, operand 1, single buffered']
    #allocation7 [shape = 's32[1]{0}', space=sflag, size = 0x4, scoped, tag = 'scoped memory for tpu_custom_call.1']
    #allocation8 [shape = 'u8[8192]{0}', space=vmem, size = 0x2000, scoped, tag = 'input window, operand 2, single buffered']
    #allocation9 [shape = 'u8[65536]{0}', space=vmem, size = 0x10000, scoped, tag = 'input window, operand 3, single buffered']
    #allocation10 [shape = 's32[1]{0}', space=sflag, size = 0x4, scoped, tag = 'scoped memory for tpu_custom_call.1']
    #allocation11 [shape = 'u8[65536]{0}', space=vmem, size = 0x10000, scoped, tag = 'input window, operand 5, single buffered']
    #allocation12 [shape = 'u8[65536]{0}', space=vmem, size = 0x10000, scoped, tag = 'input window, operand 7, single buffered']
    #allocation13 [shape = 's32[1]{0}', space=sflag, size = 0x4, scoped, tag = 'scoped memory for tpu_custom_call.1']
    #allocation14 [shape = 'u8[512]{0}', space=smem, size = 0x200, scoped, tag = 'input window, operand 12, single buffered']
    #allocation15 [shape = 'u8[8192]{0}', space=vmem, size = 0x2000, scoped, tag = 'output window, operand 0, single buffered']
    %18 = vsyncpa [#allocation3], 0
    %19 = vsyncpa [#allocation7], 0
    %20 = vsyncpa [#allocation10], 0
    %21 = vsyncpa [#allocation13], 0
    %22 = vsyncpa [#allocation5], 0
    %23 = vsyncpa [#allocation4], 0
    // Predicated region
    $region2: #{tpu_custom_call.1} parent=1 // pred_check
      _
    $region3: #{tpu_custom_call.1} parent=1 // pred_check_branch
      %25 = sbr.rel (0) target = $region5
    $region4: #{tpu_custom_call.1} parent=1 // pred_region
      %s27 = ssub.s32 256, 256
      %28 = vsyncadd [#allocation3], %s27
      %s29 = sshll.u32 [#allocation2], 4
      %s30 = int_to_ptr.vmem [resolvable:$true] %s29
      %35 = dma.hbm_to_vmem [thread:$0]  %s0, 256, %s30, [#allocation3], 128, 128, 8
    $region5: #{tpu_custom_call.1} parent=1 // pred_fallthru
      _
    // Predicated region
    $region6: #{tpu_custom_call.1} parent=1 // pred_check
      _
    $region7: #{tpu_custom_call.1} parent=1 // pred_check_branch
      %37 = sbr.rel (0) target = $region9
    $region8: #{tpu_custom_call.1} parent=1 // pred_region
      %s39 = ssub.s32 256, 256
      %40 = vsyncadd [#allocation7], %s39
      %s41 = sshll.u32 [#allocation6], 4
      %s42 = int_to_ptr.vmem [resolvable:$true] %s41
      %47 = dma.hbm_to_vmem [thread:$0]  %s1, 256, %s42, [#allocation7], 128, 128, 8
    $region9: #{tpu_custom_call.1} parent=1 // pred_fallthru
      _
    // Predicated region
    $region10: #{tpu_custom_call.1} parent=1 // pred_check
      _
    $region11: #{tpu_custom_call.1} parent=1 // pred_check_branch
      %49 = sbr.rel (0) target = $region13
    $region12: #{tpu_custom_call.1} parent=1 // pred_region
      %s51 = ssub.s32 256, 256
      %52 = vsyncadd [#allocation7], %s51
      %s53 = sshll.u32 [#allocation8], 4
      %s54 = int_to_ptr.vmem [resolvable:$true] %s53
      %59 = dma.hbm_to_vmem [thread:$0]  %s2, 256, %s54, [#allocation7], 128, 128, 8
    $region13: #{tpu_custom_call.1} parent=1 // pred_fallthru
      _
    // Predicated region
    $region14: #{tpu_custom_call.1} parent=1 // pred_check
      _
    $region15: #{tpu_custom_call.1} parent=1 // pred_check_branch
      %61 = sbr.rel (0) target = $region17
    $region16: #{tpu_custom_call.1} parent=1 // pred_region
      %s63 = ssub.s32 2048, 2048
      %64 = vsyncadd [#allocation10], %s63
      %s65 = sshll.u32 [#allocation9], 4
      %s66 = int_to_ptr.vmem [resolvable:$true] %s65
      %71 = dma.hbm_to_vmem [thread:$0]  %s3, 2048, %s66, [#allocation10], 128, 128, 8
    $region17: #{tpu_custom_call.1} parent=1 // pred_fallthru
      _
    // Predicated region
    $region18: #{tpu_custom_call.1} parent=1 // pred_check
      _
    $region19: #{tpu_custom_call.1} parent=1 // pred_check_branch
      %73 = sbr.rel (0) target = $region21
    $region20: #{tpu_custom_call.1} parent=1 // pred_region
      _
    $region21: #{tpu_custom_call.1} parent=1 // pred_fallthru
      _
    // Predicated region
    $region22: #{tpu_custom_call.1} parent=1 // pred_check
      _
    $region23: #{tpu_custom_call.1} parent=1 // pred_check_branch
      %75 = sbr.rel (0) target = $region25
    $region24: #{tpu_custom_call.1} parent=1 // pred_region
      %s77 = ssub.s32 2048, 2048
      %78 = vsyncadd [#allocation10], %s77
      %s79 = sshll.u32 [#allocation11], 4
      %s80 = int_to_ptr.vmem [resolvable:$true] %s79
      %85 = dma.hbm_to_vmem [thread:$0]  %s5, 2048, %s80, [#allocation10], 128, 128, 8
    $region25: #{tpu_custom_call.1} parent=1 // pred_fallthru
      _
    // Predicated region
    $region26: #{tpu_custom_call.1} parent=1 // pred_check
      _
    $region27: #{tpu_custom_call.1} parent=1 // pred_check_branch
      %87 = sbr.rel (0) target = $region29
    $region28: #{tpu_custom_call.1} parent=1 // pred_region
      _
    $region29: #{tpu_custom_call.1} parent=1 // pred_fallthru
      _
    // Predicated region
    $region30: #{tpu_custom_call.1} parent=1 // pred_check
      _
    $region31: #{tpu_custom_call.1} parent=1 // pred_check_branch
      %89 = sbr.rel (0) target = $region33
    $region32: #{tpu_custom_call.1} parent=1 // pred_region
      %s91 = ssub.s32 2048, 2048
      %92 = vsyncadd [#allocation13], %s91
      %s93 = sshll.u32 [#allocation12], 4
      %s94 = int_to_ptr.vmem [resolvable:$true] %s93
      %99 = dma.hbm_to_vmem [thread:$0]  %s7, 2048, %s94, [#allocation13], 128, 128, 8
    $region33: #{tpu_custom_call.1} parent=1 // pred_fallthru
      _
    // Predicated region
    $region34: #{tpu_custom_call.1} parent=1 // pred_check
      _
    $region35: #{tpu_custom_call.1} parent=1 // pred_check_branch
      %101 = sbr.rel (0) target = $region37
    $region36: #{tpu_custom_call.1} parent=1 // pred_region
      _
    $region37: #{tpu_custom_call.1} parent=1 // pred_fallthru
      _
    // Predicated region
    $region38: #{tpu_custom_call.1} parent=1 // pred_check
      _
    $region39: #{tpu_custom_call.1} parent=1 // pred_check_branch
      %103 = sbr.rel (0) target = $region41
    $region40: #{tpu_custom_call.1} parent=1 // pred_region
      _
    $region41: #{tpu_custom_call.1} parent=1 // pred_fallthru
      _
    // Predicated region
    $region42: #{tpu_custom_call.1} parent=1 // pred_check
      _
    $region43: #{tpu_custom_call.1} parent=1 // pred_check_branch
      %105 = sbr.rel (0) target = $region45
    $region44: #{tpu_custom_call.1} parent=1 // pred_region
      _
    $region45: #{tpu_custom_call.1} parent=1 // pred_fallthru
      _
    // Predicated region
    $region46: #{tpu_custom_call.1} parent=1 // pred_check
      _
    $region47: #{tpu_custom_call.1} parent=1 // pred_check_branch
      %107 = sbr.rel (0) target = $region49
    $region48: #{tpu_custom_call.1} parent=1 // pred_region
      _
    $region49: #{tpu_custom_call.1} parent=1 // pred_fallthru
      _
    // Predicated region
    $region50: #{tpu_custom_call.1} parent=1 // pred_check
      _
    $region51: #{tpu_custom_call.1} parent=1 // pred_check_branch
      %109 = sbr.rel (0) target = $region53
    $region52: #{tpu_custom_call.1} parent=1 // pred_region
      %s111 = ssub.s32 16, 16
      %112 = vsyncadd [#allocation5], %s111
      %s114 = sshll.u32 %s12, 4
      %s115 = int_to_ptr.vmem [resolvable:$true] %s114
      %117 = dma.vmem_to_smem %s115, 16, [#allocation14], [#allocation5]
    $region53: #{tpu_custom_call.1} parent=1 // pred_fallthru
      _
    // Predicated region
    $region54: #{tpu_custom_call.1} parent=1 // pred_check
      _
    $region55: #{tpu_custom_call.1} parent=1 // pred_check_branch
      %119 = sbr.rel (0) target = $region57
    $region56: #{tpu_custom_call.1} parent=1 // pred_region
      %120 = dma.done [#allocation3], 256
    $region57: #{tpu_custom_call.1} parent=1 // pred_fallthru
      _
    // Predicated region
    $region58: #{tpu_custom_call.1} parent=1 // pred_check
      _
    $region59: #{tpu_custom_call.1} parent=1 // pred_check_branch
      %122 = sbr.rel (0) target = $region61
    $region60: #{tpu_custom_call.1} parent=1 // pred_region
      %123 = dma.done [#allocation7], 256
    $region61: #{tpu_custom_call.1} parent=1 // pred_fallthru
      _
    // Predicated region
    $region62: #{tpu_custom_call.1} parent=1 // pred_check
      _
    $region63: #{tpu_custom_call.1} parent=1 // pred_check_branch
      %125 = sbr.rel (0) target = $region65
    $region64: #{tpu_custom_call.1} parent=1 // pred_region
      %126 = dma.done [#allocation7], 256
    $region65: #{tpu_custom_call.1} parent=1 // pred_fallthru
      _
    // Predicated region
    $region66: #{tpu_custom_call.1} parent=1 // pred_check
      _
    $region67: #{tpu_custom_call.1} parent=1 // pred_check_branch
      %128 = sbr.rel (0) target = $region69
    $region68: #{tpu_custom_call.1} parent=1 // pred_region
      %129 = dma.done [#allocation10], 2048
    $region69: #{tpu_custom_call.1} parent=1 // pred_fallthru
      _
    // Predicated region
    $region70: #{tpu_custom_call.1} parent=1 // pred_check
      _
    $region71: #{tpu_custom_call.1} parent=1 // pred_check_branch
      %131 = sbr.rel (0) target = $region73
    $region72: #{tpu_custom_call.1} parent=1 // pred_region
      %132 = dma.done [#allocation10], 2048
    $region73: #{tpu_custom_call.1} parent=1 // pred_fallthru
      _
    // Predicated region
    $region74: #{tpu_custom_call.1} parent=1 // pred_check
      _
    $region75: #{tpu_custom_call.1} parent=1 // pred_check_branch
      %134 = sbr.rel (0) target = $region77
    $region76: #{tpu_custom_call.1} parent=1 // pred_region
      %135 = dma.done [#allocation13], 2048
    $region77: #{tpu_custom_call.1} parent=1 // pred_fallthru
      _
    // Predicated region
    $region78: #{tpu_custom_call.1} parent=1 // pred_check
      _
    $region79: #{tpu_custom_call.1} parent=1 // pred_check_branch
      %137 = sbr.rel (0) target = $region81
    $region80: #{tpu_custom_call.1} parent=1 // pred_region
      %138 = dma.done [#allocation5], 16
    $region81: #{tpu_custom_call.1} parent=1 // pred_fallthru
      _
    %139 = sfence
    %v140 = vld [vmem:[#allocation2] sm:$0xff]
    %v141 = vld [vmem:[#allocation2 + $0x8] sm:$0xff]
    %v142 = vld [vmem:[#allocation6] sm:$0xff]
    %v143 = vld [vmem:[#allocation6 + $0x8] sm:$0xff]
    %v144 = vld [vmem:[#allocation8] sm:$0xff]
    %v145 = vld [vmem:[#allocation8 + $0x8] sm:$0xff]
    %v146 = vld [vmem:[#allocation9] sm:$0xff]
    %v147 = vld [vmem:[#allocation9 + $0x8] sm:$0xff]
    %v148 = vld [vmem:[#allocation9 + $0x10] sm:$0xff]
    %v149 = vld [vmem:[#allocation9 + $0x18] sm:$0xff]
    %v150 = vld [vmem:[#allocation9 + $0x20] sm:$0xff]
    %v151 = vld [vmem:[#allocation9 + $0x28] sm:$0xff]
    %v152 = vld [vmem:[#allocation9 + $0x30] sm:$0xff]
    %v153 = vld [vmem:[#allocation9 + $0x38] sm:$0xff]
    %v154 = vld [vmem:[#allocation9 + $0x40] sm:$0xff]
    %v155 = vld [vmem:[#allocation9 + $0x48] sm:$0xff]
    %v156 = vld [vmem:[#allocation9 + $0x50] sm:$0xff]
    %v157 = vld [vmem:[#allocation9 + $0x58] sm:$0xff]
    %v158 = vld [vmem:[#allocation9 + $0x60] sm:$0xff]
    %v159 = vld [vmem:[#allocation9 + $0x68] sm:$0xff]
    %v160 = vld [vmem:[#allocation9 + $0x70] sm:$0xff]
    %v161 = vld [vmem:[#allocation9 + $0x78] sm:$0xff]
    %v162 = vld [vmem:[%s4] sm:$0x1]
    %v164 = vlaneseq
    %v165 = vshrl.u32 %v164, 7
    %v166 = vsub.s32 0, %v165
    %v167 = vrot.slane %v162, %v166
    %169 = vmatprep.subr.mxu0 0.0
    %170 = vmatpush1.msra.mxu0 %v146
    %171 = vmatprep.subr.mxu0 0.0
    %172 = vmatpush1.msra.mxu0 %v147
    %173 = vmatprep.subr.mxu0 0.0
    %174 = vmatpush1.msra.mxu0 %v148
    %175 = vmatprep.subr.mxu0 0.0
    %176 = vmatpush1.msra.mxu0 %v149
    %177 = vmatprep.subr.mxu0 0.0
    %178 = vmatpush1.msra.mxu0 %v150
    %179 = vmatprep.subr.mxu0 0.0
    %180 = vmatpush1.msra.mxu0 %v151
    %181 = vmatprep.subr.mxu0 0.0
    %182 = vmatpush1.msra.mxu0 %v152
    %183 = vmatprep.subr.mxu0 0.0
    %184 = vmatpush1.msra.mxu0 %v153
    %185 = vmatprep.subr.mxu0 0.0
    %186 = vmatpush1.msra.mxu0 %v154
    %187 = vmatprep.subr.mxu0 0.0
    %188 = vmatpush1.msra.mxu0 %v155
    %189 = vmatprep.subr.mxu0 0.0
    %190 = vmatpush1.msra.mxu0 %v156
    %191 = vmatprep.subr.mxu0 0.0
    %192 = vmatpush1.msra.mxu0 %v157
    %193 = vmatprep.subr.mxu0 0.0
    %194 = vmatpush1.msra.mxu0 %v158
    %195 = vmatprep.subr.mxu0 0.0
    %196 = vmatpush1.msra.mxu0 %v159
    %197 = vmatprep.subr.mxu0 0.0
    %198 = vmatpush1.msra.mxu0 %v160
    %199 = vmatprep.subr.mxu0 0.0
    %200 = vmatpush1.msra.mxu0 %v161
    %201 = vmatprep.subr.mxu0 0.0
    %202 = vmatpush1.msra.mxu0 0.0
    %203 = vmatprep.subr.mxu0 0.0
    %204 = vmatpush1.msra.mxu0 0.0
    %205 = vmatprep.subr.mxu0 0.0
    %206 = vmatpush1.msra.mxu0 0.0
    %207 = vmatprep.subr.mxu0 0.0
    %208 = vmatpush1.msra.mxu0 0.0
    %209 = vmatprep.subr.mxu0 0.0
    %210 = vmatpush1.msra.mxu0 0.0
    %211 = vmatprep.subr.mxu0 0.0
    %212 = vmatpush1.msra.mxu0 0.0
    %213 = vmatprep.subr.mxu0 0.0
    %214 = vmatpush1.msra.mxu0 0.0
    %215 = vmatprep.subr.mxu0 0.0
    %216 = vmatpush1.msra.mxu0 0.0
    %217 = vmatprep.subr.mxu0 0.0
    %218 = vmatpush1.msra.mxu0 0.0
    %219 = vmatprep.subr.mxu0 0.0
    %220 = vmatpush1.msra.mxu0 0.0
    %221 = vmatprep.subr.mxu0 0.0
    %222 = vmatpush1.msra.mxu0 0.0
    %223 = vmatprep.subr.mxu0 0.0
    %224 = vmatpush1.msra.mxu0 0.0
    %225 = vmatprep.subr.mxu0 0.0
    %226 = vmatpush1.msra.mxu0 0.0
    %227 = vmatprep.subr.mxu0 0.0
    %228 = vmatpush1.msra.mxu0 0.0
    %229 = vmatprep.subr.mxu0 0.0
    %230 = vmatpush1.msra.mxu0 0.0
    %231 = vmatprep.subr.mxu0 0.0
    %232 = vmatpush1.msra.mxu0 0.0
    %233 = vmatprep.mubr.f32.mxu0 0.0
    %234 = vmatmul.mubr.f32.gmra.mrb[0].mxu0 %v140
    %v235 = vpop.f32.mrb[0].mxu0
    %v236 = vadd.f32 %v167, %v235
    %v237 = vpop.f32.mrb[0].mxu0
    %238 = vmatprep.mubr.f32.mxu0 0.0
    %239 = vmatmul.mubr.f32.gmra.mrb[0].mxu0 %v141
    %v240 = vpop.f32.mrb[0].mxu0
    %v241 = vadd.f32 %v167, %v240
    %v242 = vpop.f32.mrb[0].mxu0
    %243 = vdwg.mxu0
    %v244 = vtanh.pop %v236
    %v245 = vtanh.pop %v241
    %v246 = vld [vmem:[#allocation11] sm:$0xff]
    %v247 = vld [vmem:[#allocation11 + $0x8] sm:$0xff]
    %v248 = vld [vmem:[#allocation11 + $0x10] sm:$0xff]
    %v249 = vld [vmem:[#allocation11 + $0x18] sm:$0xff]
    %v250 = vld [vmem:[#allocation11 + $0x20] sm:$0xff]
    %v251 = vld [vmem:[#allocation11 + $0x28] sm:$0xff]
    %v252 = vld [vmem:[#allocation11 + $0x30] sm:$0xff]
    %v253 = vld [vmem:[#allocation11 + $0x38] sm:$0xff]
    %v254 = vld [vmem:[#allocation11 + $0x40] sm:$0xff]
    %v255 = vld [vmem:[#allocation11 + $0x48] sm:$0xff]
    %v256 = vld [vmem:[#allocation11 + $0x50] sm:$0xff]
    %v257 = vld [vmem:[#allocation11 + $0x58] sm:$0xff]
    %v258 = vld [vmem:[#allocation11 + $0x60] sm:$0xff]
    %v259 = vld [vmem:[#allocation11 + $0x68] sm:$0xff]
    %v260 = vld [vmem:[#allocation11 + $0x70] sm:$0xff]
    %v261 = vld [vmem:[#allocation11 + $0x78] sm:$0xff]
    %v262 = vld [vmem:[%s6] sm:$0x1]
    %v264 = vlaneseq
    %v265 = vshrl.u32 %v264, 7
    %v266 = vsub.s32 0, %v265
    %v267 = vrot.slane %v262, %v266
    %269 = vmatprep.subr.mxu0 0.0
    %270 = vmatpush1.msra.mxu0 %v246
    %271 = vmatprep.subr.mxu0 0.0
    %272 = vmatpush1.msra.mxu0 %v247
    %273 = vmatprep.subr.mxu0 0.0
    %274 = vmatpush1.msra.mxu0 %v248
    %275 = vmatprep.subr.mxu0 0.0
    %276 = vmatpush1.msra.mxu0 %v249
    %277 = vmatprep.subr.mxu0 0.0
    %278 = vmatpush1.msra.mxu0 %v250
    %279 = vmatprep.subr.mxu0 0.0
    %280 = vmatpush1.msra.mxu0 %v251
    %281 = vmatprep.subr.mxu0 0.0
    %282 = vmatpush1.msra.mxu0 %v252
    %283 = vmatprep.subr.mxu0 0.0
    %284 = vmatpush1.msra.mxu0 %v253
    %285 = vmatprep.subr.mxu0 0.0
    %286 = vmatpush1.msra.mxu0 %v254
    %287 = vmatprep.subr.mxu0 0.0
    %288 = vmatpush1.msra.mxu0 %v255
    %289 = vmatprep.subr.mxu0 0.0
    %290 = vmatpush1.msra.mxu0 %v256
    %291 = vmatprep.subr.mxu0 0.0
    %292 = vmatpush1.msra.mxu0 %v257
    %293 = vmatprep.subr.mxu0 0.0
    %294 = vmatpush1.msra.mxu0 %v258
    %295 = vmatprep.subr.mxu0 0.0
    %296 = vmatpush1.msra.mxu0 %v259
    %297 = vmatprep.subr.mxu0 0.0
    %298 = vmatpush1.msra.mxu0 %v260
    %299 = vmatprep.subr.mxu0 0.0
    %300 = vmatpush1.msra.mxu0 %v261
    %301 = vmatprep.subr.mxu0 0.0
    %302 = vmatpush1.msra.mxu0 0.0
    %303 = vmatprep.subr.mxu0 0.0
    %304 = vmatpush1.msra.mxu0 0.0
    %305 = vmatprep.subr.mxu0 0.0
    %306 = vmatpush1.msra.mxu0 0.0
    %307 = vmatprep.subr.mxu0 0.0
    %308 = vmatpush1.msra.mxu0 0.0
    %309 = vmatprep.subr.mxu0 0.0
    %310 = vmatpush1.msra.mxu0 0.0
    %311 = vmatprep.subr.mxu0 0.0
    %312 = vmatpush1.msra.mxu0 0.0
    %313 = vmatprep.subr.mxu0 0.0
    %314 = vmatpush1.msra.mxu0 0.0
    %315 = vmatprep.subr.mxu0 0.0
    %316 = vmatpush1.msra.mxu0 0.0
    %317 = vmatprep.subr.mxu0 0.0
    %318 = vmatpush1.msra.mxu0 0.0
    %319 = vmatprep.subr.mxu0 0.0
    %320 = vmatpush1.msra.mxu0 0.0
    %321 = vmatprep.subr.mxu0 0.0
    %322 = vmatpush1.msra.mxu0 0.0
    %323 = vmatprep.subr.mxu0 0.0
    %324 = vmatpush1.msra.mxu0 0.0
    %325 = vmatprep.subr.mxu0 0.0
    %326 = vmatpush1.msra.mxu0 0.0
    %327 = vmatprep.subr.mxu0 0.0
    %328 = vmatpush1.msra.mxu0 0.0
    %329 = vmatprep.subr.mxu0 0.0
    %330 = vmatpush1.msra.mxu0 0.0
    %331 = vmatprep.subr.mxu0 0.0
    %332 = vmatpush1.msra.mxu0 0.0
    %333 = vmatprep.mubr.f32.mxu0 0.0
    %334 = vmatmul.mubr.f32.gmra.mrb[0].mxu0 %v142
    %v335 = vpop.f32.mrb[0].mxu0
    %v336 = vadd.f32 %v267, %v335
    %v337 = vpop.f32.mrb[0].mxu0
    %338 = vmatprep.mubr.f32.mxu0 0.0
    %339 = vmatmul.mubr.f32.gmra.mrb[0].mxu0 %v143
    %v340 = vpop.f32.mrb[0].mxu0
    %v341 = vadd.f32 %v267, %v340
    %v342 = vpop.f32.mrb[0].mxu0
    %343 = vdwg.mxu0
    %v344 = vtanh.pop %v336
    %v345 = vtanh.pop %v341
    %v346 = vld [vmem:[#allocation12] sm:$0xff]
    %v347 = vld [vmem:[#allocation12 + $0x8] sm:$0xff]
    %v348 = vld [vmem:[#allocation12 + $0x10] sm:$0xff]
    %v349 = vld [vmem:[#allocation12 + $0x18] sm:$0xff]
    %v350 = vld [vmem:[#allocation12 + $0x20] sm:$0xff]
    %v351 = vld [vmem:[#allocation12 + $0x28] sm:$0xff]
    %v352 = vld [vmem:[#allocation12 + $0x30] sm:$0xff]
    %v353 = vld [vmem:[#allocation12 + $0x38] sm:$0xff]
    %v354 = vld [vmem:[#allocation12 + $0x40] sm:$0xff]
    %v355 = vld [vmem:[#allocation12 + $0x48] sm:$0xff]
    %v356 = vld [vmem:[#allocation12 + $0x50] sm:$0xff]
    %v357 = vld [vmem:[#allocation12 + $0x58] sm:$0xff]
    %v358 = vld [vmem:[#allocation12 + $0x60] sm:$0xff]
    %v359 = vld [vmem:[#allocation12 + $0x68] sm:$0xff]
    %v360 = vld [vmem:[#allocation12 + $0x70] sm:$0xff]
    %v361 = vld [vmem:[#allocation12 + $0x78] sm:$0xff]
    %v362 = vld [vmem:[%s8] sm:$0x1]
    %v364 = vlaneseq
    %v365 = vshrl.u32 %v364, 7
    %v366 = vsub.s32 0, %v365
    %v367 = vrot.slane %v362, %v366
    %369 = vmatprep.subr.mxu0 0.0
    %370 = vmatpush1.msra.mxu0 %v346
    %371 = vmatprep.subr.mxu0 0.0
    %372 = vmatpush1.msra.mxu0 %v347
    %373 = vmatprep.subr.mxu0 0.0
    %374 = vmatpush1.msra.mxu0 %v348
    %375 = vmatprep.subr.mxu0 0.0
    %376 = vmatpush1.msra.mxu0 %v349
    %377 = vmatprep.subr.mxu0 0.0
    %378 = vmatpush1.msra.mxu0 %v350
    %379 = vmatprep.subr.mxu0 0.0
    %380 = vmatpush1.msra.mxu0 %v351
    %381 = vmatprep.subr.mxu0 0.0
    %382 = vmatpush1.msra.mxu0 %v352
    %383 = vmatprep.subr.mxu0 0.0
    %384 = vmatpush1.msra.mxu0 %v353
    %385 = vmatprep.subr.mxu0 0.0
    %386 = vmatpush1.msra.mxu0 %v354
    %387 = vmatprep.subr.mxu0 0.0
    %388 = vmatpush1.msra.mxu0 %v355
    %389 = vmatprep.subr.mxu0 0.0
    %390 = vmatpush1.msra.mxu0 %v356
    %391 = vmatprep.subr.mxu0 0.0
    %392 = vmatpush1.msra.mxu0 %v357
    %393 = vmatprep.subr.mxu0 0.0
    %394 = vmatpush1.msra.mxu0 %v358
    %395 = vmatprep.subr.mxu0 0.0
    %396 = vmatpush1.msra.mxu0 %v359
    %397 = vmatprep.subr.mxu0 0.0
    %398 = vmatpush1.msra.mxu0 %v360
    %399 = vmatprep.subr.mxu0 0.0
    %400 = vmatpush1.msra.mxu0 %v361
    %401 = vmatprep.subr.mxu0 0.0
    %402 = vmatpush1.msra.mxu0 0.0
    %403 = vmatprep.subr.mxu0 0.0
    %404 = vmatpush1.msra.mxu0 0.0
    %405 = vmatprep.subr.mxu0 0.0
    %406 = vmatpush1.msra.mxu0 0.0
    %407 = vmatprep.subr.mxu0 0.0
    %408 = vmatpush1.msra.mxu0 0.0
    %409 = vmatprep.subr.mxu0 0.0
    %410 = vmatpush1.msra.mxu0 0.0
    %411 = vmatprep.subr.mxu0 0.0
    %412 = vmatpush1.msra.mxu0 0.0
    %413 = vmatprep.subr.mxu0 0.0
    %414 = vmatpush1.msra.mxu0 0.0
    %415 = vmatprep.subr.mxu0 0.0
    %416 = vmatpush1.msra.mxu0 0.0
    %417 = vmatprep.subr.mxu0 0.0
    %418 = vmatpush1.msra.mxu0 0.0
    %419 = vmatprep.subr.mxu0 0.0
    %420 = vmatpush1.msra.mxu0 0.0
    %421 = vmatprep.subr.mxu0 0.0
    %422 = vmatpush1.msra.mxu0 0.0
    %423 = vmatprep.subr.mxu0 0.0
    %424 = vmatpush1.msra.mxu0 0.0
    %425 = vmatprep.subr.mxu0 0.0
    %426 = vmatpush1.msra.mxu0 0.0
    %427 = vmatprep.subr.mxu0 0.0
    %428 = vmatpush1.msra.mxu0 0.0
    %429 = vmatprep.subr.mxu0 0.0
    %430 = vmatpush1.msra.mxu0 0.0
    %431 = vmatprep.subr.mxu0 0.0
    %432 = vmatpush1.msra.mxu0 0.0
    %433 = vmatprep.mubr.f32.mxu0 0.0
    %434 = vmatmul.mubr.f32.gmra.mrb[0].mxu0 %v144
    %v435 = vpop.f32.mrb[0].mxu0
    %v436 = vadd.f32 %v367, %v435
    %v437 = vpop.f32.mrb[0].mxu0
    %438 = vmatprep.mubr.f32.mxu0 0.0
    %439 = vmatmul.mubr.f32.gmra.mrb[0].mxu0 %v145
    %v440 = vpop.f32.mrb[0].mxu0
    %v441 = vadd.f32 %v367, %v440
    %v442 = vpop.f32.mrb[0].mxu0
    %443 = vdwg.mxu0
    %v444 = vtanh.pop %v436
    %v445 = vtanh.pop %v441
    %s446 = sld [smem:[#allocation14]]
    %v447 = vld [vmem:[%s9] sm:$0x1]
    %v448 = vld [vmem:[%s9 + $0x1] sm:$0x1]
    %v449 = vld [vmem:[%s9 + $0x2] sm:$0x1]
    %v450 = vlaneseq
    %v451 = vshrl.u32 %v450, 7
    %v452 = vsub.s32 0, %v451
    %v453 = vrot.slane %v447, %v452
    %v454 = vmul.f32 %v142, %v453
    %v455 = vmul.f32 %v143, %v453
    %v456 = vlaneseq
    %v457 = vshrl.u32 %v456, 7
    %v458 = vsub.s32 0, %v457
    %v459 = vrot.slane %v448, %v458
    %v460 = vmul.f32 %v140, %v459
    %v461 = vmul.f32 %v141, %v459
    %v462 = vadd.f32 %v454, %v460
    %v463 = vadd.f32 %v455, %v461
    %v464 = vmul.f32 %v142, %v140
    %v465 = vmul.f32 %v143, %v141
    %v466 = vlaneseq
    %v467 = vshrl.u32 %v466, 7
    %v468 = vsub.s32 0, %v467
    %v469 = vrot.slane %v449, %v468
    %v470 = vmul.f32 %v464, %v469
    %v471 = vmul.f32 %v465, %v469
    %v472 = vadd.f32 %v462, %v470
    %v473 = vadd.f32 %v463, %v471
    %474 = vadd.xlane.f32.xlu0 %v472
    %v475 = vpop.xlane.xlu0 %474
    %476 = vadd.xlane.f32.xlu0 %v473
    %v477 = vpop.xlane.xlu0 %476
    %v478 = vstv %s446
    %v479 = vadd.f32 %v475, %v478
    %v480 = vadd.f32 %v477, %v478
    %v481 = vxor.u32 %v479, 2147483648
    %v482 = vxor.u32 %v480, 2147483648
    %v483 = vmul.f32 %v481, 1.442695
    %v484 = vpow.pop %v483
    %v485 = vmul.f32 %v482, 1.442695
    %v486 = vpow.pop %v485
    %v487 = vadd.f32 %v484, 1.0
    %v488 = vadd.f32 %v486, 1.0
    %v489 = vrcp.pop %v487
    %v490 = vmul.f32 1.0, %v489
    %v491 = vrcp.pop %v488
    %v492 = vmul.f32 1.0, %v491
    %s493 = sld [smem:[#allocation14 + $0x1]]
    %v494 = vld [vmem:[%s10] sm:$0x1]
    %v495 = vld [vmem:[%s10 + $0x1] sm:$0x1]
    %v496 = vld [vmem:[%s10 + $0x2] sm:$0x1]
    %v497 = vlaneseq
    %v498 = vshrl.u32 %v497, 7
    %v499 = vsub.s32 0, %v498
    %v500 = vrot.slane %v494, %v499
    %v501 = vmul.f32 %v144, %v500
    %v502 = vmul.f32 %v145, %v500
    %v503 = vlaneseq
    %v504 = vshrl.u32 %v503, 7
    %v505 = vsub.s32 0, %v504
    %v506 = vrot.slane %v495, %v505
    %v507 = vmul.f32 %v140, %v506
    %v508 = vmul.f32 %v141, %v506
    %v509 = vadd.f32 %v501, %v507
    %v510 = vadd.f32 %v502, %v508
    %v511 = vmul.f32 %v144, %v140
    %v512 = vmul.f32 %v145, %v141
    %v513 = vlaneseq
    %v514 = vshrl.u32 %v513, 7
    %v515 = vsub.s32 0, %v514
    %v516 = vrot.slane %v496, %v515
    %v517 = vmul.f32 %v511, %v516
    %v518 = vmul.f32 %v512, %v516
    %v519 = vadd.f32 %v509, %v517
    %v520 = vadd.f32 %v510, %v518
    %521 = vadd.xlane.f32.xlu0 %v519
    %v522 = vpop.xlane.xlu0 %521
    %523 = vadd.xlane.f32.xlu0 %v520
    %v524 = vpop.xlane.xlu0 %523
    %v525 = vstv %s493
    %v526 = vadd.f32 %v522, %v525
    %v527 = vadd.f32 %v524, %v525
    %v528 = vxor.u32 %v526, 2147483648
    %v529 = vxor.u32 %v527, 2147483648
    %v530 = vmul.f32 %v528, 1.442695
    %v531 = vpow.pop %v530
    %v532 = vmul.f32 %v529, 1.442695
    %v533 = vpow.pop %v532
    %v534 = vadd.f32 %v531, 1.0
    %v535 = vadd.f32 %v533, 1.0
    %v536 = vrcp.pop %v534
    %v537 = vmul.f32 1.0, %v536
    %v538 = vrcp.pop %v535
    %v539 = vmul.f32 1.0, %v538
    %s540 = sld [smem:[#allocation14 + $0x2]]
    %v541 = vld [vmem:[%s11] sm:$0x1]
    %v542 = vld [vmem:[%s11 + $0x1] sm:$0x1]
    %v543 = vld [vmem:[%s11 + $0x2] sm:$0x1]
    %v544 = vlaneseq
    %v545 = vshrl.u32 %v544, 7
    %v546 = vsub.s32 0, %v545
    %v547 = vrot.slane %v541, %v546
    %v548 = vmul.f32 %v142, %v547
    %v549 = vmul.f32 %v143, %v547
    %v550 = vlaneseq
    %v551 = vshrl.u32 %v550, 7
    %v552 = vsub.s32 0, %v551
    %v553 = vrot.slane %v542, %v552
    %v554 = vmul.f32 %v144, %v553
    %v555 = vmul.f32 %v145, %v553
    %v556 = vadd.f32 %v548, %v554
    %v557 = vadd.f32 %v549, %v555
    %v558 = vmul.f32 %v142, %v144
    %v559 = vmul.f32 %v143, %v145
    %v560 = vlaneseq
    %v561 = vshrl.u32 %v560, 7
    %v562 = vsub.s32 0, %v561
    %v563 = vrot.slane %v543, %v562
    %v564 = vmul.f32 %v558, %v563
    %v565 = vmul.f32 %v559, %v563
    %v566 = vadd.f32 %v556, %v564
    %v567 = vadd.f32 %v557, %v565
    %568 = vadd.xlane.f32.xlu0 %v566
    %v569 = vpop.xlane.xlu0 %568
    %570 = vadd.xlane.f32.xlu0 %v567
    %v571 = vpop.xlane.xlu0 %570
    %v572 = vstv %s540
    %v573 = vadd.f32 %v569, %v572
    %v574 = vadd.f32 %v571, %v572
    %v575 = vxor.u32 %v573, 2147483648
    %v576 = vxor.u32 %v574, 2147483648
    %v577 = vmul.f32 %v575, 1.442695
    %v578 = vpow.pop %v577
    %v579 = vmul.f32 %v576, 1.442695
    %v580 = vpow.pop %v579
    %v581 = vadd.f32 %v578, 1.0
    %v582 = vadd.f32 %v580, 1.0
    %v583 = vrcp.pop %v581
    %v584 = vmul.f32 1.0, %v583
    %v585 = vrcp.pop %v582
    %v586 = vmul.f32 1.0, %v585
    %v587 = vsub.f32 2.0, %v490
    %v588 = vsub.f32 2.0, %v492
    %v589 = vsub.f32 %v587, %v537
    %v590 = vsub.f32 %v588, %v539
    %v591 = vmul.f32 %v589, %v244
    %v592 = vmul.f32 %v590, %v245
    %v593 = vadd.f32 %v490, %v584
    %v594 = vadd.f32 %v492, %v586
    %v595 = vmul.f32 %v593, %v344
    %v596 = vmul.f32 %v594, %v345
    %v597 = vadd.f32 %v591, %v595
    %v598 = vadd.f32 %v592, %v596
    %v599 = vadd.f32 %v537, 1.0
    %v600 = vadd.f32 %v539, 1.0
    %v601 = vsub.f32 %v599, %v584
    %v602 = vsub.f32 %v600, %v586
    %v603 = vmul.f32 %v601, %v444
    %v604 = vmul.f32 %v602, %v445
    %v605 = vadd.f32 %v597, %v603
    %v606 = vadd.f32 %v598, %v604
    %607 = vst [vmem:[#allocation15] sm:$0xff] %v605
    %608 = vst [vmem:[#allocation15 + $0x8] sm:$0xff] %v606
    // Predicated region
    $region82: #{tpu_custom_call.1} parent=1 // pred_check
      _
    $region83: #{tpu_custom_call.1} parent=1 // pred_check_branch
      %610 = sbr.rel (0) target = $region85
    $region84: #{tpu_custom_call.1} parent=1 // pred_region
      %s612 = ssub.s32 256, 256
      %613 = vsyncadd [#allocation4], %s612
      %s614 = sshll.u32 [#allocation15], 4
      %s615 = int_to_ptr.vmem [resolvable:$true] %s614
      %620 = dma.vmem_to_hbm [thread:$0]  %s615, 256, %s13, [#allocation4], 128, 128, 8
    $region85: #{tpu_custom_call.1} parent=1 // pred_fallthru
      _
    // Predicated region
    $region86: #{tpu_custom_call.1} parent=1 // pred_check
      _
    $region87: #{tpu_custom_call.1} parent=1 // pred_check_branch
      %622 = sbr.rel (0) target = $region89
    $region88: #{tpu_custom_call.1} parent=1 // pred_region
      %623 = dma.done [#allocation4], 256
    $region89: #{tpu_custom_call.1} parent=1 // pred_fallthru
      _
    %624 = vsyncpa [#allocation3], 1
    %625 = vsyncpa [#allocation7], 1
    %626 = vsyncpa [#allocation10], 1
    %627 = vsyncpa [#allocation13], 1
    %628 = vsyncpa [#allocation4], 1
    %629 = vsyncpa [#allocation5], 1

// kernel: tpu_custom_call.1
$region0: #{tpu_custom_call.1}
  #allocation0 [shape = 'u32[]', space=smem, size = 0x4, offset = 0x4, fixed_abs, tag = 'smem constant byte address 0x4 - core index']
  #allocation1 [shape = 'u32[144,128]{1,0:T(1,128)}', space=vmem, size = 0x12000, scoped, tag = 'internal scratch']
  %s0 = inlined_call_operand.hbm [shape: f32[16,128], index: 0, kind: input, shape index: {}]
  %s1 = inlined_call_operand.hbm [shape: f32[16,128], index: 1, kind: input, shape index: {}]
  %s2 = inlined_call_operand.hbm [shape: f32[16,128], index: 2, kind: input, shape index: {}]
  %s3 = inlined_call_operand.hbm [shape: f32[128,128], index: 3, kind: input, shape index: {}]
  %s4 = inlined_call_operand.vmem [shape: f32[1,128], index: 4, kind: input, shape index: {}]
  %s5 = inlined_call_operand.hbm [shape: f32[128,128], index: 5, kind: input, shape index: {}]
  %s6 = inlined_call_operand.vmem [shape: f32[1,128], index: 6, kind: input, shape index: {}]
  %s7 = inlined_call_operand.hbm [shape: f32[128,128], index: 7, kind: input, shape index: {}]
  %s8 = inlined_call_operand.vmem [shape: f32[1,128], index: 8, kind: input, shape index: {}]
  %s9 = inlined_call_operand.vmem [shape: f32[8,128], index: 9, kind: input, shape index: {}]
  %s10 = inlined_call_operand.vmem [shape: f32[8,128], index: 10, kind: input, shape index: {}]
  %s11 = inlined_call_operand.vmem [shape: f32[8,128], index: 11, kind: input, shape index: {}]
  %s12 = inlined_call_operand.vmem [shape: f32[3], index: 12, kind: input, shape index: {}]
  %s13 = inlined_call_operand.hbm [shape: f32[16,128], index: 13, kind: output, shape index: {}]
  %s14 = sld [smem:[#allocation0]]
  $region90: #{tpu_custom_call.1} parent=0
    _
  %s16 = ssub.s32 1, %s14
  %s17 = scalar_select 0, %s16, %s14
  $region1: #{tpu_custom_call.1} parent=0
    #allocation2 [shape = 'u8[8192]{0}', space=vmem, size = 0x2000, scoped, tag = 'input window, operand 0, single buffered']
    #allocation3 [shape = 's32[1]{0}', space=sflag, size = 0x4, scoped, tag = 'scoped memory for tpu_custom_call.1']
    #allocation4 [shape = 's32[1]{0}', space=sflag, size = 0x4, scoped, tag = 'scoped memory for tpu_custom_call.1']
    #allocation5 [shape = 's32[1]{0}', space=sflag, size = 0x4, scoped, tag = 'scoped memory for tpu_custom_call.1']
    #allocation6 [shape = 'u8[8192]{0}', space=vmem, size = 0x2000, scoped, tag = 'input window, operand 1, single buffered']
    #allocation7 [shape = 's32[1]{0}', space=sflag, size = 0x4, scoped, tag = 'scoped memory for tpu_custom_call.1']
    #allocation8 [shape = 'u8[8192]{0}', space=vmem, size = 0x2000, scoped, tag = 'input window, operand 2, single buffered']
    #allocation9 [shape = 'u8[65536]{0}', space=vmem, size = 0x10000, scoped, tag = 'input window, operand 3, single buffered']
    #allocation10 [shape = 's32[1]{0}', space=sflag, size = 0x4, scoped, tag = 'scoped memory for tpu_custom_call.1']
    #allocation11 [shape = 'u8[65536]{0}', space=vmem, size = 0x10000, scoped, tag = 'input window, operand 5, single buffered']
    #allocation12 [shape = 'u8[65536]{0}', space=vmem, size = 0x10000, scoped, tag = 'input window, operand 7, single buffered']
    #allocation13 [shape = 's32[1]{0}', space=sflag, size = 0x4, scoped, tag = 'scoped memory for tpu_custom_call.1']
    #allocation14 [shape = 'u8[512]{0}', space=smem, size = 0x200, scoped, tag = 'input window, operand 12, single buffered']
    #allocation15 [shape = 'u8[8192]{0}', space=vmem, size = 0x2000, scoped, tag = 'output window, operand 0, single buffered']
    %18 = vsyncpa [#allocation3], 0
    %19 = vsyncpa [#allocation7], 0
    %20 = vsyncpa [#allocation10], 0
    %21 = vsyncpa [#allocation13], 0
    %22 = vsyncpa [#allocation5], 0
    %23 = vsyncpa [#allocation4], 0
    // Predicated region
    $region2: #{tpu_custom_call.1} parent=1 // pred_check
      _
    $region3: #{tpu_custom_call.1} parent=1 // pred_check_branch
      %25 = sbr.rel (0) target = $region5
    $region4: #{tpu_custom_call.1} parent=1 // pred_region
      %s27 = ssub.s32 256, 256
      %28 = vsyncadd [#allocation3], %s27
      %s29 = sshll.u32 [#allocation2], 4
      %s30 = int_to_ptr.vmem [resolvable:$true] %s29
      %35 = dma.hbm_to_vmem [thread:$0]  %s0, 256, %s30, [#allocation3], 128, 128, 8
    $region5: #{tpu_custom_call.1} parent=1 // pred_fallthru
      _
    // Predicated region
    $region6: #{tpu_custom_call.1} parent=1 // pred_check
      _
    $region7: #{tpu_custom_call.1} parent=1 // pred_check_branch
      %37 = sbr.rel (0) target = $region9
    $region8: #{tpu_custom_call.1} parent=1 // pred_region
      %s39 = ssub.s32 256, 256
      %40 = vsyncadd [#allocation7], %s39
      %s41 = sshll.u32 [#allocation6], 4
      %s42 = int_to_ptr.vmem [resolvable:$true] %s41
      %47 = dma.hbm_to_vmem [thread:$0]  %s1, 256, %s42, [#allocation7], 128, 128, 8
    $region9: #{tpu_custom_call.1} parent=1 // pred_fallthru
      _
    // Predicated region
    $region10: #{tpu_custom_call.1} parent=1 // pred_check
      _
    $region11: #{tpu_custom_call.1} parent=1 // pred_check_branch
      %49 = sbr.rel (0) target = $region13
    $region12: #{tpu_custom_call.1} parent=1 // pred_region
      %s51 = ssub.s32 256, 256
      %52 = vsyncadd [#allocation7], %s51
      %s53 = sshll.u32 [#allocation8], 4
      %s54 = int_to_ptr.vmem [resolvable:$true] %s53
      %59 = dma.hbm_to_vmem [thread:$0]  %s2, 256, %s54, [#allocation7], 128, 128, 8
    $region13: #{tpu_custom_call.1} parent=1 // pred_fallthru
      _
    // Predicated region
    $region14: #{tpu_custom_call.1} parent=1 // pred_check
      _
    $region15: #{tpu_custom_call.1} parent=1 // pred_check_branch
      %61 = sbr.rel (0) target = $region17
    $region16: #{tpu_custom_call.1} parent=1 // pred_region
      %s63 = ssub.s32 2048, 2048
      %64 = vsyncadd [#allocation10], %s63
      %s65 = sshll.u32 [#allocation9], 4
      %s66 = int_to_ptr.vmem [resolvable:$true] %s65
      %71 = dma.hbm_to_vmem [thread:$0]  %s3, 2048, %s66, [#allocation10], 128, 128, 8
    $region17: #{tpu_custom_call.1} parent=1 // pred_fallthru
      _
    // Predicated region
    $region18: #{tpu_custom_call.1} parent=1 // pred_check
      _
    $region19: #{tpu_custom_call.1} parent=1 // pred_check_branch
      %73 = sbr.rel (0) target = $region21
    $region20: #{tpu_custom_call.1} parent=1 // pred_region
      _
    $region21: #{tpu_custom_call.1} parent=1 // pred_fallthru
      _
    // Predicated region
    $region22: #{tpu_custom_call.1} parent=1 // pred_check
      _
    $region23: #{tpu_custom_call.1} parent=1 // pred_check_branch
      %75 = sbr.rel (0) target = $region25
    $region24: #{tpu_custom_call.1} parent=1 // pred_region
      %s77 = ssub.s32 2048, 2048
      %78 = vsyncadd [#allocation10], %s77
      %s79 = sshll.u32 [#allocation11], 4
      %s80 = int_to_ptr.vmem [resolvable:$true] %s79
      %85 = dma.hbm_to_vmem [thread:$0]  %s5, 2048, %s80, [#allocation10], 128, 128, 8
    $region25: #{tpu_custom_call.1} parent=1 // pred_fallthru
      _
    // Predicated region
    $region26: #{tpu_custom_call.1} parent=1 // pred_check
      _
    $region27: #{tpu_custom_call.1} parent=1 // pred_check_branch
      %87 = sbr.rel (0) target = $region29
    $region28: #{tpu_custom_call.1} parent=1 // pred_region
      _
    $region29: #{tpu_custom_call.1} parent=1 // pred_fallthru
      _
    // Predicated region
    $region30: #{tpu_custom_call.1} parent=1 // pred_check
      _
    $region31: #{tpu_custom_call.1} parent=1 // pred_check_branch
      %89 = sbr.rel (0) target = $region33
    $region32: #{tpu_custom_call.1} parent=1 // pred_region
      %s91 = ssub.s32 2048, 2048
      %92 = vsyncadd [#allocation13], %s91
      %s93 = sshll.u32 [#allocation12], 4
      %s94 = int_to_ptr.vmem [resolvable:$true] %s93
      %99 = dma.hbm_to_vmem [thread:$0]  %s7, 2048, %s94, [#allocation13], 128, 128, 8
    $region33: #{tpu_custom_call.1} parent=1 // pred_fallthru
      _
    // Predicated region
    $region34: #{tpu_custom_call.1} parent=1 // pred_check
      _
    $region35: #{tpu_custom_call.1} parent=1 // pred_check_branch
      %101 = sbr.rel (0) target = $region37
    $region36: #{tpu_custom_call.1} parent=1 // pred_region
      _
    $region37: #{tpu_custom_call.1} parent=1 // pred_fallthru
      _
    // Predicated region
    $region38: #{tpu_custom_call.1} parent=1 // pred_check
      _
    $region39: #{tpu_custom_call.1} parent=1 // pred_check_branch
      %103 = sbr.rel (0) target = $region41
    $region40: #{tpu_custom_call.1} parent=1 // pred_region
      _
    $region41: #{tpu_custom_call.1} parent=1 // pred_fallthru
      _
    // Predicated region
    $region42: #{tpu_custom_call.1} parent=1 // pred_check
      _
    $region43: #{tpu_custom_call.1} parent=1 // pred_check_branch
      %105 = sbr.rel (0) target = $region45
    $region44: #{tpu_custom_call.1} parent=1 // pred_region
      _
    $region45: #{tpu_custom_call.1} parent=1 // pred_fallthru
      _
    // Predicated region
    $region46: #{tpu_custom_call.1} parent=1 // pred_check
      _
    $region47: #{tpu_custom_call.1} parent=1 // pred_check_branch
      %107 = sbr.rel (0) target = $region49
    $region48: #{tpu_custom_call.1} parent=1 // pred_region
      _
    $region49: #{tpu_custom_call.1} parent=1 // pred_fallthru
      _
    // Predicated region
    $region50: #{tpu_custom_call.1} parent=1 // pred_check
      _
    $region51: #{tpu_custom_call.1} parent=1 // pred_check_branch
      %109 = sbr.rel (0) target = $region53
    $region52: #{tpu_custom_call.1} parent=1 // pred_region
      %s111 = ssub.s32 16, 16
      %112 = vsyncadd [#allocation5], %s111
      %s114 = sshll.u32 %s12, 4
      %s115 = int_to_ptr.vmem [resolvable:$true] %s114
      %117 = dma.vmem_to_smem %s115, 16, [#allocation14], [#allocation5]
    $region53: #{tpu_custom_call.1} parent=1 // pred_fallthru
      _
    // Predicated region
    $region54: #{tpu_custom_call.1} parent=1 // pred_check
      _
    $region55: #{tpu_custom_call.1} parent=1 // pred_check_branch
      %119 = sbr.rel (0) target = $region57
    $region56: #{tpu_custom_call.1} parent=1 // pred_region
      %120 = dma.done [#allocation3], 256
    $region57: #{tpu_custom_call.1} parent=1 // pred_fallthru
      _
    // Predicated region
    $region58: #{tpu_custom_call.1} parent=1 // pred_check
      _
    $region59: #{tpu_custom_call.1} parent=1 // pred_check_branch
      %122 = sbr.rel (0) target = $region61
    $region60: #{tpu_custom_call.1} parent=1 // pred_region
      %123 = dma.done [#allocation7], 256
    $region61: #{tpu_custom_call.1} parent=1 // pred_fallthru
      _
    // Predicated region
    $region62: #{tpu_custom_call.1} parent=1 // pred_check
      _
    $region63: #{tpu_custom_call.1} parent=1 // pred_check_branch
      %125 = sbr.rel (0) target = $region65
    $region64: #{tpu_custom_call.1} parent=1 // pred_region
      %126 = dma.done [#allocation7], 256
    $region65: #{tpu_custom_call.1} parent=1 // pred_fallthru
      _
    // Predicated region
    $region66: #{tpu_custom_call.1} parent=1 // pred_check
      _
    $region67: #{tpu_custom_call.1} parent=1 // pred_check_branch
      %128 = sbr.rel (0) target = $region69
    $region68: #{tpu_custom_call.1} parent=1 // pred_region
      %129 = dma.done [#allocation10], 2048
    $region69: #{tpu_custom_call.1} parent=1 // pred_fallthru
      _
    // Predicated region
    $region70: #{tpu_custom_call.1} parent=1 // pred_check
      _
    $region71: #{tpu_custom_call.1} parent=1 // pred_check_branch
      %131 = sbr.rel (0) target = $region73
    $region72: #{tpu_custom_call.1} parent=1 // pred_region
      %132 = dma.done [#allocation10], 2048
    $region73: #{tpu_custom_call.1} parent=1 // pred_fallthru
      _
    // Predicated region
    $region74: #{tpu_custom_call.1} parent=1 // pred_check
      _
    $region75: #{tpu_custom_call.1} parent=1 // pred_check_branch
      %134 = sbr.rel (0) target = $region77
    $region76: #{tpu_custom_call.1} parent=1 // pred_region
      %135 = dma.done [#allocation13], 2048
    $region77: #{tpu_custom_call.1} parent=1 // pred_fallthru
      _
    // Predicated region
    $region78: #{tpu_custom_call.1} parent=1 // pred_check
      _
    $region79: #{tpu_custom_call.1} parent=1 // pred_check_branch
      %137 = sbr.rel (0) target = $region81
    $region80: #{tpu_custom_call.1} parent=1 // pred_region
      %138 = dma.done [#allocation5], 16
    $region81: #{tpu_custom_call.1} parent=1 // pred_fallthru
      _
    %139 = sfence
    %v140 = vld [vmem:[#allocation2] sm:$0xff]
    %v141 = vld [vmem:[#allocation2 + $0x8] sm:$0xff]
    %v142 = vld [vmem:[#allocation6] sm:$0xff]
    %v143 = vld [vmem:[#allocation6 + $0x8] sm:$0xff]
    %v144 = vld [vmem:[#allocation8] sm:$0xff]
    %v145 = vld [vmem:[#allocation8 + $0x8] sm:$0xff]
    %v146 = vld [vmem:[#allocation9] sm:$0xff]
    %v147 = vld [vmem:[#allocation9 + $0x8] sm:$0xff]
    %v148 = vld [vmem:[#allocation9 + $0x10] sm:$0xff]
    %v149 = vld [vmem:[#allocation9 + $0x18] sm:$0xff]
    %v150 = vld [vmem:[#allocation9 + $0x20] sm:$0xff]
    %v151 = vld [vmem:[#allocation9 + $0x28] sm:$0xff]
    %v152 = vld [vmem:[#allocation9 + $0x30] sm:$0xff]
    %v153 = vld [vmem:[#allocation9 + $0x38] sm:$0xff]
    %v154 = vld [vmem:[#allocation9 + $0x40] sm:$0xff]
    %v155 = vld [vmem:[#allocation9 + $0x48] sm:$0xff]
    %v156 = vld [vmem:[#allocation9 + $0x50] sm:$0xff]
    %v157 = vld [vmem:[#allocation9 + $0x58] sm:$0xff]
    %v158 = vld [vmem:[#allocation9 + $0x60] sm:$0xff]
    %v159 = vld [vmem:[#allocation9 + $0x68] sm:$0xff]
    %v160 = vld [vmem:[#allocation9 + $0x70] sm:$0xff]
    %v161 = vld [vmem:[#allocation9 + $0x78] sm:$0xff]
    %v162 = vld [vmem:[%s4] sm:$0x1]
    %v164 = vlaneseq
    %v165 = vshrl.u32 %v164, 7
    %v166 = vsub.s32 0, %v165
    %v167 = vrot.slane %v162, %v166
    %169 = vmatprep.subr.mxu0 0.0
    %170 = vmatpush1.msra.mxu0 %v146
    %171 = vmatprep.subr.mxu0 0.0
    %172 = vmatpush1.msra.mxu0 %v147
    %173 = vmatprep.subr.mxu0 0.0
    %174 = vmatpush1.msra.mxu0 %v148
    %175 = vmatprep.subr.mxu0 0.0
    %176 = vmatpush1.msra.mxu0 %v149
    %177 = vmatprep.subr.mxu0 0.0
    %178 = vmatpush1.msra.mxu0 %v150
    %179 = vmatprep.subr.mxu0 0.0
    %180 = vmatpush1.msra.mxu0 %v151
    %181 = vmatprep.subr.mxu0 0.0
    %182 = vmatpush1.msra.mxu0 %v152
    %183 = vmatprep.subr.mxu0 0.0
    %184 = vmatpush1.msra.mxu0 %v153
    %185 = vmatprep.subr.mxu0 0.0
    %186 = vmatpush1.msra.mxu0 %v154
    %187 = vmatprep.subr.mxu0 0.0
    %188 = vmatpush1.msra.mxu0 %v155
    %189 = vmatprep.subr.mxu0 0.0
    %190 = vmatpush1.msra.mxu0 %v156
    %191 = vmatprep.subr.mxu0 0.0
    %192 = vmatpush1.msra.mxu0 %v157
    %193 = vmatprep.subr.mxu0 0.0
    %194 = vmatpush1.msra.mxu0 %v158
    %195 = vmatprep.subr.mxu0 0.0
    %196 = vmatpush1.msra.mxu0 %v159
    %197 = vmatprep.subr.mxu0 0.0
    %198 = vmatpush1.msra.mxu0 %v160
    %199 = vmatprep.subr.mxu0 0.0
    %200 = vmatpush1.msra.mxu0 %v161
    %201 = vmatprep.subr.mxu0 0.0
    %202 = vmatpush1.msra.mxu0 0.0
    %203 = vmatprep.subr.mxu0 0.0
    %204 = vmatpush1.msra.mxu0 0.0
    %205 = vmatprep.subr.mxu0 0.0
    %206 = vmatpush1.msra.mxu0 0.0
    %207 = vmatprep.subr.mxu0 0.0
    %208 = vmatpush1.msra.mxu0 0.0
    %209 = vmatprep.subr.mxu0 0.0
    %210 = vmatpush1.msra.mxu0 0.0
    %211 = vmatprep.subr.mxu0 0.0
    %212 = vmatpush1.msra.mxu0 0.0
    %213 = vmatprep.subr.mxu0 0.0
    %214 = vmatpush1.msra.mxu0 0.0
    %215 = vmatprep.subr.mxu0 0.0
    %216 = vmatpush1.msra.mxu0 0.0
    %217 = vmatprep.subr.mxu0 0.0
    %218 = vmatpush1.msra.mxu0 0.0
    %219 = vmatprep.subr.mxu0 0.0
    %220 = vmatpush1.msra.mxu0 0.0
    %221 = vmatprep.subr.mxu0 0.0
    %222 = vmatpush1.msra.mxu0 0.0
    %223 = vmatprep.subr.mxu0 0.0
    %224 = vmatpush1.msra.mxu0 0.0
    %225 = vmatprep.subr.mxu0 0.0
    %226 = vmatpush1.msra.mxu0 0.0
    %227 = vmatprep.subr.mxu0 0.0
    %228 = vmatpush1.msra.mxu0 0.0
    %229 = vmatprep.subr.mxu0 0.0
    %230 = vmatpush1.msra.mxu0 0.0
    %231 = vmatprep.subr.mxu0 0.0
    %232 = vmatpush1.msra.mxu0 0.0
    %233 = vmatprep.mubr.f32.mxu0 0.0
    %234 = vmatmul.mubr.f32.gmra.mrb[0].mxu0 %v140
    %v235 = vpop.f32.mrb[0].mxu0
    %v236 = vadd.f32 %v167, %v235
    %v237 = vpop.f32.mrb[0].mxu0
    %238 = vmatprep.mubr.f32.mxu0 0.0
    %239 = vmatmul.mubr.f32.gmra.mrb[0].mxu0 %v141
    %v240 = vpop.f32.mrb[0].mxu0
    %v241 = vadd.f32 %v167, %v240
    %v242 = vpop.f32.mrb[0].mxu0
    %243 = vdwg.mxu0
    %v244 = vtanh.pop %v236
    %v245 = vtanh.pop %v241
    %v246 = vld [vmem:[#allocation11] sm:$0xff]
    %v247 = vld [vmem:[#allocation11 + $0x8] sm:$0xff]
    %v248 = vld [vmem:[#allocation11 + $0x10] sm:$0xff]
    %v249 = vld [vmem:[#allocation11 + $0x18] sm:$0xff]
    %v250 = vld [vmem:[#allocation11 + $0x20] sm:$0xff]
    %v251 = vld [vmem:[#allocation11 + $0x28] sm:$0xff]
    %v252 = vld [vmem:[#allocation11 + $0x30] sm:$0xff]
    %v253 = vld [vmem:[#allocation11 + $0x38] sm:$0xff]
    %v254 = vld [vmem:[#allocation11 + $0x40] sm:$0xff]
    %v255 = vld [vmem:[#allocation11 + $0x48] sm:$0xff]
    %v256 = vld [vmem:[#allocation11 + $0x50] sm:$0xff]
    %v257 = vld [vmem:[#allocation11 + $0x58] sm:$0xff]
    %v258 = vld [vmem:[#allocation11 + $0x60] sm:$0xff]
    %v259 = vld [vmem:[#allocation11 + $0x68] sm:$0xff]
    %v260 = vld [vmem:[#allocation11 + $0x70] sm:$0xff]
    %v261 = vld [vmem:[#allocation11 + $0x78] sm:$0xff]
    %v262 = vld [vmem:[%s6] sm:$0x1]
    %v264 = vlaneseq
    %v265 = vshrl.u32 %v264, 7
    %v266 = vsub.s32 0, %v265
    %v267 = vrot.slane %v262, %v266
    %269 = vmatprep.subr.mxu0 0.0
    %270 = vmatpush1.msra.mxu0 %v246
    %271 = vmatprep.subr.mxu0 0.0
    %272 = vmatpush1.msra.mxu0 %v247
    %273 = vmatprep.subr.mxu0 0.0
    %274 = vmatpush1.msra.mxu0 %v248
    %275 = vmatprep.subr.mxu0 0.0
    %276 = vmatpush1.msra.mxu0 %v249
    %277 = vmatprep.subr.mxu0 0.0
    %278 = vmatpush1.msra.mxu0 %v250
    %279 = vmatprep.subr.mxu0 0.0
    %280 = vmatpush1.msra.mxu0 %v251
    %281 = vmatprep.subr.mxu0 0.0
    %282 = vmatpush1.msra.mxu0 %v252
    %283 = vmatprep.subr.mxu0 0.0
    %284 = vmatpush1.msra.mxu0 %v253
    %285 = vmatprep.subr.mxu0 0.0
    %286 = vmatpush1.msra.mxu0 %v254
    %287 = vmatprep.subr.mxu0 0.0
    %288 = vmatpush1.msra.mxu0 %v255
    %289 = vmatprep.subr.mxu0 0.0
    %290 = vmatpush1.msra.mxu0 %v256
    %291 = vmatprep.subr.mxu0 0.0
    %292 = vmatpush1.msra.mxu0 %v257
    %293 = vmatprep.subr.mxu0 0.0
    %294 = vmatpush1.msra.mxu0 %v258
    %295 = vmatprep.subr.mxu0 0.0
    %296 = vmatpush1.msra.mxu0 %v259
    %297 = vmatprep.subr.mxu0 0.0
    %298 = vmatpush1.msra.mxu0 %v260
    %299 = vmatprep.subr.mxu0 0.0
    %300 = vmatpush1.msra.mxu0 %v261
    %301 = vmatprep.subr.mxu0 0.0
    %302 = vmatpush1.msra.mxu0 0.0
    %303 = vmatprep.subr.mxu0 0.0
    %304 = vmatpush1.msra.mxu0 0.0
    %305 = vmatprep.subr.mxu0 0.0
    %306 = vmatpush1.msra.mxu0 0.0
    %307 = vmatprep.subr.mxu0 0.0
    %308 = vmatpush1.msra.mxu0 0.0
    %309 = vmatprep.subr.mxu0 0.0
    %310 = vmatpush1.msra.mxu0 0.0
    %311 = vmatprep.subr.mxu0 0.0
    %312 = vmatpush1.msra.mxu0 0.0
    %313 = vmatprep.subr.mxu0 0.0
    %314 = vmatpush1.msra.mxu0 0.0
    %315 = vmatprep.subr.mxu0 0.0
    %316 = vmatpush1.msra.mxu0 0.0
    %317 = vmatprep.subr.mxu0 0.0
    %318 = vmatpush1.msra.mxu0 0.0
    %319 = vmatprep.subr.mxu0 0.0
    %320 = vmatpush1.msra.mxu0 0.0
    %321 = vmatprep.subr.mxu0 0.0
    %322 = vmatpush1.msra.mxu0 0.0
    %323 = vmatprep.subr.mxu0 0.0
    %324 = vmatpush1.msra.mxu0 0.0
    %325 = vmatprep.subr.mxu0 0.0
    %326 = vmatpush1.msra.mxu0 0.0
    %327 = vmatprep.subr.mxu0 0.0
    %328 = vmatpush1.msra.mxu0 0.0
    %329 = vmatprep.subr.mxu0 0.0
    %330 = vmatpush1.msra.mxu0 0.0
    %331 = vmatprep.subr.mxu0 0.0
    %332 = vmatpush1.msra.mxu0 0.0
    %333 = vmatprep.mubr.f32.mxu0 0.0
    %334 = vmatmul.mubr.f32.gmra.mrb[0].mxu0 %v142
    %v335 = vpop.f32.mrb[0].mxu0
    %v336 = vadd.f32 %v267, %v335
    %v337 = vpop.f32.mrb[0].mxu0
    %338 = vmatprep.mubr.f32.mxu0 0.0
    %339 = vmatmul.mubr.f32.gmra.mrb[0].mxu0 %v143
    %v340 = vpop.f32.mrb[0].mxu0
    %v341 = vadd.f32 %v267, %v340
    %v342 = vpop.f32.mrb[0].mxu0
    %343 = vdwg.mxu0
    %v344 = vtanh.pop %v336
    %v345 = vtanh.pop %v341
    %v346 = vld [vmem:[#allocation12] sm:$0xff]
    %v347 = vld [vmem:[#allocation12 + $0x8] sm:$0xff]
    %v348 = vld [vmem:[#allocation12 + $0x10] sm:$0xff]
    %v349 = vld [vmem:[#allocation12 + $0x18] sm:$0xff]
    %v350 = vld [vmem:[#allocation12 + $0x20] sm:$0xff]
    %v351 = vld [vmem:[#allocation12 + $0x28] sm:$0xff]
    %v352 = vld [vmem:[#allocation12 + $0x30] sm:$0xff]
    %v353 = vld [vmem:[#allocation12 + $0x38] sm:$0xff]
    %v354 = vld [vmem:[#allocation12 + $0x40] sm:$0xff]
    %v355 = vld [vmem:[#allocation12 + $0x48] sm:$0xff]
    %v356 = vld [vmem:[#allocation12 + $0x50] sm:$0xff]
    %v357 = vld [vmem:[#allocation12 + $0x58] sm:$0xff]
    %v358 = vld [vmem:[#allocation12 + $0x60] sm:$0xff]
    %v359 = vld [vmem:[#allocation12 + $0x68] sm:$0xff]
    %v360 = vld [vmem:[#allocation12 + $0x70] sm:$0xff]
    %v361 = vld [vmem:[#allocation12 + $0x78] sm:$0xff]
    %v362 = vld [vmem:[%s8] sm:$0x1]
    %v364 = vlaneseq
    %v365 = vshrl.u32 %v364, 7
    %v366 = vsub.s32 0, %v365
    %v367 = vrot.slane %v362, %v366
    %369 = vmatprep.subr.mxu0 0.0
    %370 = vmatpush1.msra.mxu0 %v346
    %371 = vmatprep.subr.mxu0 0.0
    %372 = vmatpush1.msra.mxu0 %v347
    %373 = vmatprep.subr.mxu0 0.0
    %374 = vmatpush1.msra.mxu0 %v348
    %375 = vmatprep.subr.mxu0 0.0
    %376 = vmatpush1.msra.mxu0 %v349
    %377 = vmatprep.subr.mxu0 0.0
    %378 = vmatpush1.msra.mxu0 %v350
    %379 = vmatprep.subr.mxu0 0.0
    %380 = vmatpush1.msra.mxu0 %v351
    %381 = vmatprep.subr.mxu0 0.0
    %382 = vmatpush1.msra.mxu0 %v352
    %383 = vmatprep.subr.mxu0 0.0
    %384 = vmatpush1.msra.mxu0 %v353
    %385 = vmatprep.subr.mxu0 0.0
    %386 = vmatpush1.msra.mxu0 %v354
    %387 = vmatprep.subr.mxu0 0.0
    %388 = vmatpush1.msra.mxu0 %v355
    %389 = vmatprep.subr.mxu0 0.0
    %390 = vmatpush1.msra.mxu0 %v356
    %391 = vmatprep.subr.mxu0 0.0
    %392 = vmatpush1.msra.mxu0 %v357
    %393 = vmatprep.subr.mxu0 0.0
    %394 = vmatpush1.msra.mxu0 %v358
    %395 = vmatprep.subr.mxu0 0.0
    %396 = vmatpush1.msra.mxu0 %v359
    %397 = vmatprep.subr.mxu0 0.0
    %398 = vmatpush1.msra.mxu0 %v360
    %399 = vmatprep.subr.mxu0 0.0
    %400 = vmatpush1.msra.mxu0 %v361
    %401 = vmatprep.subr.mxu0 0.0
    %402 = vmatpush1.msra.mxu0 0.0
    %403 = vmatprep.subr.mxu0 0.0
    %404 = vmatpush1.msra.mxu0 0.0
    %405 = vmatprep.subr.mxu0 0.0
    %406 = vmatpush1.msra.mxu0 0.0
    %407 = vmatprep.subr.mxu0 0.0
    %408 = vmatpush1.msra.mxu0 0.0
    %409 = vmatprep.subr.mxu0 0.0
    %410 = vmatpush1.msra.mxu0 0.0
    %411 = vmatprep.subr.mxu0 0.0
    %412 = vmatpush1.msra.mxu0 0.0
    %413 = vmatprep.subr.mxu0 0.0
    %414 = vmatpush1.msra.mxu0 0.0
    %415 = vmatprep.subr.mxu0 0.0
    %416 = vmatpush1.msra.mxu0 0.0
    %417 = vmatprep.subr.mxu0 0.0
    %418 = vmatpush1.msra.mxu0 0.0
    %419 = vmatprep.subr.mxu0 0.0
    %420 = vmatpush1.msra.mxu0 0.0
    %421 = vmatprep.subr.mxu0 0.0
    %422 = vmatpush1.msra.mxu0 0.0
    %423 = vmatprep.subr.mxu0 0.0
    %424 = vmatpush1.msra.mxu0 0.0
    %425 = vmatprep.subr.mxu0 0.0
    %426 = vmatpush1.msra.mxu0 0.0
    %427 = vmatprep.subr.mxu0 0.0
    %428 = vmatpush1.msra.mxu0 0.0
    %429 = vmatprep.subr.mxu0 0.0
    %430 = vmatpush1.msra.mxu0 0.0
    %431 = vmatprep.subr.mxu0 0.0
    %432 = vmatpush1.msra.mxu0 0.0
    %433 = vmatprep.mubr.f32.mxu0 0.0
    %434 = vmatmul.mubr.f32.gmra.mrb[0].mxu0 %v144
    %v435 = vpop.f32.mrb[0].mxu0
    %v436 = vadd.f32 %v367, %v435
    %v437 = vpop.f32.mrb[0].mxu0
    %438 = vmatprep.mubr.f32.mxu0 0.0
    %439 = vmatmul.mubr.f32.gmra.mrb[0].mxu0 %v145
    %v440 = vpop.f32.mrb[0].mxu0
    %v441 = vadd.f32 %v367, %v440
    %v442 = vpop.f32.mrb[0].mxu0
    %443 = vdwg.mxu0
    %v444 = vtanh.pop %v436
    %v445 = vtanh.pop %v441
    %s446 = sld [smem:[#allocation14]]
    %v447 = vld [vmem:[%s9] sm:$0x1]
    %v448 = vld [vmem:[%s9 + $0x1] sm:$0x1]
    %v449 = vld [vmem:[%s9 + $0x2] sm:$0x1]
    %v450 = vlaneseq
    %v451 = vshrl.u32 %v450, 7
    %v452 = vsub.s32 0, %v451
    %v453 = vrot.slane %v447, %v452
    %v454 = vmul.f32 %v142, %v453
    %v455 = vmul.f32 %v143, %v453
    %v456 = vlaneseq
    %v457 = vshrl.u32 %v456, 7
    %v458 = vsub.s32 0, %v457
    %v459 = vrot.slane %v448, %v458
    %v460 = vmul.f32 %v140, %v459
    %v461 = vmul.f32 %v141, %v459
    %v462 = vadd.f32 %v454, %v460
    %v463 = vadd.f32 %v455, %v461
    %v464 = vmul.f32 %v142, %v140
    %v465 = vmul.f32 %v143, %v141
    %v466 = vlaneseq
    %v467 = vshrl.u32 %v466, 7
    %v468 = vsub.s32 0, %v467
    %v469 = vrot.slane %v449, %v468
    %v470 = vmul.f32 %v464, %v469
    %v471 = vmul.f32 %v465, %v469
    %v472 = vadd.f32 %v462, %v470
    %v473 = vadd.f32 %v463, %v471
    %474 = vadd.xlane.f32.xlu0 %v472
    %v475 = vpop.xlane.xlu0 %474
    %476 = vadd.xlane.f32.xlu0 %v473
    %v477 = vpop.xlane.xlu0 %476
    %v478 = vstv %s446
    %v479 = vadd.f32 %v475, %v478
    %v480 = vadd.f32 %v477, %v478
    %v481 = vxor.u32 %v479, 2147483648
    %v482 = vxor.u32 %v480, 2147483648
    %v483 = vmul.f32 %v481, 1.442695
    %v484 = vpow.pop %v483
    %v485 = vmul.f32 %v482, 1.442695
    %v486 = vpow.pop %v485
    %v487 = vadd.f32 %v484, 1.0
    %v488 = vadd.f32 %v486, 1.0
    %v489 = vrcp.pop %v487
    %v490 = vmul.f32 1.0, %v489
    %v491 = vrcp.pop %v488
    %v492 = vmul.f32 1.0, %v491
    %s493 = sld [smem:[#allocation14 + $0x1]]
    %v494 = vld [vmem:[%s10] sm:$0x1]
    %v495 = vld [vmem:[%s10 + $0x1] sm:$0x1]
    %v496 = vld [vmem:[%s10 + $0x2] sm:$0x1]
    %v497 = vlaneseq
    %v498 = vshrl.u32 %v497, 7
    %v499 = vsub.s32 0, %v498
    %v500 = vrot.slane %v494, %v499
    %v501 = vmul.f32 %v144, %v500
    %v502 = vmul.f32 %v145, %v500
    %v503 = vlaneseq
    %v504 = vshrl.u32 %v503, 7
    %v505 = vsub.s32 0, %v504
    %v506 = vrot.slane %v495, %v505
    %v507 = vmul.f32 %v140, %v506
    %v508 = vmul.f32 %v141, %v506
    %v509 = vadd.f32 %v501, %v507
    %v510 = vadd.f32 %v502, %v508
    %v511 = vmul.f32 %v144, %v140
    %v512 = vmul.f32 %v145, %v141
    %v513 = vlaneseq
    %v514 = vshrl.u32 %v513, 7
    %v515 = vsub.s32 0, %v514
    %v516 = vrot.slane %v496, %v515
    %v517 = vmul.f32 %v511, %v516
    %v518 = vmul.f32 %v512, %v516
    %v519 = vadd.f32 %v509, %v517
    %v520 = vadd.f32 %v510, %v518
    %521 = vadd.xlane.f32.xlu0 %v519
    %v522 = vpop.xlane.xlu0 %521
    %523 = vadd.xlane.f32.xlu0 %v520
    %v524 = vpop.xlane.xlu0 %523
    %v525 = vstv %s493
    %v526 = vadd.f32 %v522, %v525
    %v527 = vadd.f32 %v524, %v525
    %v528 = vxor.u32 %v526, 2147483648
    %v529 = vxor.u32 %v527, 2147483648
    %v530 = vmul.f32 %v528, 1.442695
    %v531 = vpow.pop %v530
    %v532 = vmul.f32 %v529, 1.442695
    %v533 = vpow.pop %v532
    %v534 = vadd.f32 %v531, 1.0
    %v535 = vadd.f32 %v533, 1.0
    %v536 = vrcp.pop %v534
    %v537 = vmul.f32 1.0, %v536
    %v538 = vrcp.pop %v535
    %v539 = vmul.f32 1.0, %v538
    %s540 = sld [smem:[#allocation14 + $0x2]]
    %v541 = vld [vmem:[%s11] sm:$0x1]
    %v542 = vld [vmem:[%s11 + $0x1] sm:$0x1]
    %v543 = vld [vmem:[%s11 + $0x2] sm:$0x1]
    %v544 = vlaneseq
    %v545 = vshrl.u32 %v544, 7
    %v546 = vsub.s32 0, %v545
    %v547 = vrot.slane %v541, %v546
    %v548 = vmul.f32 %v142, %v547
    %v549 = vmul.f32 %v143, %v547
    %v550 = vlaneseq
    %v551 = vshrl.u32 %v550, 7
    %v552 = vsub.s32 0, %v551
    %v553 = vrot.slane %v542, %v552
    %v554 = vmul.f32 %v144, %v553
    %v555 = vmul.f32 %v145, %v553
    %v556 = vadd.f32 %v548, %v554
    %v557 = vadd.f32 %v549, %v555
    %v558 = vmul.f32 %v142, %v144
    %v559 = vmul.f32 %v143, %v145
    %v560 = vlaneseq
    %v561 = vshrl.u32 %v560, 7
    %v562 = vsub.s32 0, %v561
    %v563 = vrot.slane %v543, %v562
    %v564 = vmul.f32 %v558, %v563
    %v565 = vmul.f32 %v559, %v563
    %v566 = vadd.f32 %v556, %v564
    %v567 = vadd.f32 %v557, %v565
    %568 = vadd.xlane.f32.xlu0 %v566
    %v569 = vpop.xlane.xlu0 %568
    %570 = vadd.xlane.f32.xlu0 %v567
    %v571 = vpop.xlane.xlu0 %570
    %v572 = vstv %s540
    %v573 = vadd.f32 %v569, %v572
    %v574 = vadd.f32 %v571, %v572
    %v575 = vxor.u32 %v573, 2147483648
    %v576 = vxor.u32 %v574, 2147483648
    %v577 = vmul.f32 %v575, 1.442695
    %v578 = vpow.pop %v577
    %v579 = vmul.f32 %v576, 1.442695
    %v580 = vpow.pop %v579
    %v581 = vadd.f32 %v578, 1.0
    %v582 = vadd.f32 %v580, 1.0
    %v583 = vrcp.pop %v581
    %v584 = vmul.f32 1.0, %v583
    %v585 = vrcp.pop %v582
    %v586 = vmul.f32 1.0, %v585
    %v587 = vsub.f32 2.0, %v490
    %v588 = vsub.f32 2.0, %v492
    %v589 = vsub.f32 %v587, %v537
    %v590 = vsub.f32 %v588, %v539
    %v591 = vmul.f32 %v589, %v244
    %v592 = vmul.f32 %v590, %v245
    %v593 = vadd.f32 %v490, %v584
    %v594 = vadd.f32 %v492, %v586
    %v595 = vmul.f32 %v593, %v344
    %v596 = vmul.f32 %v594, %v345
    %v597 = vadd.f32 %v591, %v595
    %v598 = vadd.f32 %v592, %v596
    %v599 = vadd.f32 %v537, 1.0
    %v600 = vadd.f32 %v539, 1.0
    %v601 = vsub.f32 %v599, %v584
    %v602 = vsub.f32 %v600, %v586
    %v603 = vmul.f32 %v601, %v444
    %v604 = vmul.f32 %v602, %v445
    %v605 = vadd.f32 %v597, %v603
    %v606 = vadd.f32 %v598, %v604
    %607 = vst [vmem:[#allocation15] sm:$0xff] %v605
    %608 = vst [vmem:[#allocation15 + $0x8] sm:$0xff] %v606
    // Predicated region
    $region82: #{tpu_custom_call.1} parent=1 // pred_check
      _
    $region83: #{tpu_custom_call.1} parent=1 // pred_check_branch
      %610 = sbr.rel (0) target = $region85
    $region84: #{tpu_custom_call.1} parent=1 // pred_region
      %s612 = ssub.s32 256, 256
      %613 = vsyncadd [#allocation4], %s612
      %s614 = sshll.u32 [#allocation15], 4
      %s615 = int_to_ptr.vmem [resolvable:$true] %s614
      %620 = dma.vmem_to_hbm [thread:$0]  %s615, 256, %s13, [#allocation4], 128, 128, 8
    $region85: #{tpu_custom_call.1} parent=1 // pred_fallthru
      _
    // Predicated region
    $region86: #{tpu_custom_call.1} parent=1 // pred_check
      _
    $region87: #{tpu_custom_call.1} parent=1 // pred_check_branch
      %622 = sbr.rel (0) target = $region89
    $region88: #{tpu_custom_call.1} parent=1 // pred_region
      %623 = dma.done [#allocation4], 256
    $region89: #{tpu_custom_call.1} parent=1 // pred_fallthru
      _
    %624 = vsyncpa [#allocation3], 1
    %625 = vsyncpa [#allocation7], 1
    %626 = vsyncpa [#allocation10], 1
    %627 = vsyncpa [#allocation13], 1
    %628 = vsyncpa [#allocation4], 1
    %629 = vsyncpa [#allocation5], 1

</llo_original>
